<compile_context>
chip_gen: v5e
topology: v5e:2x2
jax: 0.10.0
libtpu: 0.0.40
codegen_flags: <defaults>
</compile_context>

<pallas_src>
import functools
import math

import jax
import jax.numpy as jnp
from jax.experimental import pallas as pl
from jax.experimental.pallas import tpu as pltpu


# ---------------------------------------------------------------------------
# hardware-adaptive knobs
# ---------------------------------------------------------------------------

_VMEM_LIMIT = None


def _vmem_limit_bytes():
    """~75% of physical VMEM: ~96 MiB on v5e/v6e (128 MiB), ~48 MiB on v7x (64 MiB)."""
    global _VMEM_LIMIT
    if _VMEM_LIMIT is None:
        try:
            cap = int(pltpu.get_tpu_info().vmem_capacity_bytes)
        except Exception:
            cap = 64 * 1024 * 1024          # conservative (v7x-sized) fallback
        _VMEM_LIMIT = min((cap * 3) // 4, 100 * 1024 * 1024)
    return _VMEM_LIMIT


def _cparams(*semantics):
    return pltpu.CompilerParams(dimension_semantics=semantics,
                                vmem_limit_bytes=_vmem_limit_bytes())


_BUFFERED1_OK = False


def _detect_buffered_support():
    """Probe pipeline_mode=pl.Buffered(1) (single-buffered weights) with a tiny
    kernel; fall back to default double-buffering if unsupported."""
    global _BUFFERED1_OK

    def copy_kernel(x_ref, o_ref):
        o_ref[...] = x_ref[...]

    try:
        out = pl.pallas_call(
            copy_kernel,
            grid=(2,),
            in_specs=[pl.BlockSpec((8, 128), lambda i: (0, 0),
                                   pipeline_mode=pl.Buffered(1))],
            out_specs=pl.BlockSpec((8, 128), lambda i: (i, 0)),
            out_shape=jax.ShapeDtypeStruct((16, 128), jnp.float32),
        )(jnp.ones((8, 128), jnp.float32))
        jax.block_until_ready(out)
        _BUFFERED1_OK = True
    except Exception:
        _BUFFERED1_OK = False


def _weight_spec(shape, index_map):
    """BlockSpec for a grid-invariant weight: single-buffered when supported
    (halves its VMEM footprint), default pipelining otherwise."""
    if _BUFFERED1_OK:
        return pl.BlockSpec(shape, index_map, pipeline_mode=pl.Buffered(1))
    return pl.BlockSpec(shape, index_map)


def _token_tile(n_tokens):
    """Largest row tile; prefer >=256-row tiles with >=2 grid steps (megacore),
    else the largest legal divisor / full extent."""
    for tm in (1024, 512, 256):
        if n_tokens % tm == 0 and n_tokens // tm >= 2:
            return tm
    for tm in (1024, 512, 256, 128, 64, 32, 16, 8):
        if tm <= n_tokens and n_tokens % tm == 0:
            return tm
    return n_tokens


def _pick_dim_tile(n, candidates):
    for c in candidates:
        if c <= n and n % c == 0:
            return c
    return n  # full extent (always a legal block size)


# ---------------------------------------------------------------------------
# Kernel A: RMSNorm + fused QKV projection + RoPE
# ---------------------------------------------------------------------------

def _qkv_rope_kernel(x_ref, nw_ref, wqkv_ref, cos_ref, sin_ref,
                     xq_ref, xk_ref, xv_ref,
                     *, eps, n_heads, n_kv_heads, head_dim):
    x = x_ref[...].astype(jnp.float32)
    ms = jnp.mean(x * x, axis=-1, keepdims=True)
    xn = x * jax.lax.rsqrt(ms + eps) * nw_ref[...]          # attention RMSNorm (f32)

    # One MXU call against the host-concatenated [wq|wk|wv] weight (bf16 x bf16).
    qkv = jnp.dot(xn.astype(jnp.bfloat16), wqkv_ref[...],
                  preferred_element_type=jnp.float32)

    Hq = n_heads * head_dim
    Hk = n_kv_heads * head_dim
    q = qkv[:, :Hq]
    k = qkv[:, Hq:Hq + Hk]
    v = qkv[:, Hq + Hk:]

    cos = cos_ref[...]                                      # (tm, head_dim) f32
    sin = sin_ref[...]                                      # (tm, head_dim) f32 (sign baked)
    half = head_dim // 2

    def rope(t, n_h):
        # Broadcast the small per-position tables across heads in-kernel.
        cos_t = jnp.concatenate([cos] * n_h, axis=1)
        sin_t = jnp.concatenate([sin] * n_h, axis=1)
        # Half-rotation in the de-interleaved per-head column layout.
        # NOTE: with production head_dim=128 these are lane-tile slices; at the
        # toy head_dim=16 they are sub-128-lane shuffles (unavoidable here).
        parts = []
        for h in range(n_h):
            base = h * head_dim
            parts.append(t[:, base + half:base + head_dim])  # b half -> a slots
            parts.append(t[:, base:base + half])             # a half -> b slots
        rot = jnp.concatenate(parts, axis=1)
        return t * cos_t + rot * sin_t

    xq_ref[...] = rope(q, n_heads).astype(xq_ref.dtype)
    xk_ref[...] = rope(k, n_kv_heads).astype(xk_ref.dtype)
    xv_ref[...] = v.astype(xv_ref.dtype)


def attn_input_proj(x2d, attn_norm_w, wqkv, cos_hd, sin_hd, cfg):
    T, D = x2d.shape
    HD = cfg["head_dim"]
    Hq = cfg["n_heads"] * HD
    Hk = cfg["n_kv_heads"] * HD
    tm = _token_tile(T)

    row = lambda w: pl.BlockSpec((tm, w), lambda i: (i, 0))
    kern = functools.partial(
        _qkv_rope_kernel, eps=cfg["norm_eps"], n_heads=cfg["n_heads"],
        n_kv_heads=cfg["n_kv_heads"], head_dim=HD)

    return pl.pallas_call(
        kern,
        grid=(T // tm,),
        in_specs=[row(D),
                  _weight_spec((1, D), lambda i: (0, 0)),
                  # TODO(synk): at production D the fused QKV weight should be
                  # tiled over the contraction (norm weight folded into it)
                  # instead of held full-extent; kept full + single-buffered here.
                  _weight_spec((D, Hq + 2 * Hk), lambda i: (0, 0)),
                  row(HD), row(HD)],
        out_specs=[row(Hq), row(Hk), row(Hk)],
        out_shape=[jax.ShapeDtypeStruct((T, Hq), jnp.bfloat16),
                   jax.ShapeDtypeStruct((T, Hk), jnp.bfloat16),
                   jax.ShapeDtypeStruct((T, Hk), jnp.bfloat16)],
        compiler_params=_cparams("parallel"),
    )(x2d, attn_norm_w, wqkv, cos_hd, sin_hd)


# ---------------------------------------------------------------------------
# Kernel B: attention core (grid over batch x kv-head groups)
# ---------------------------------------------------------------------------

def _groups_per_block(n_kv_heads, n_rep, head_dim):
    """Smallest number of KV groups per program whose q/k lane widths satisfy
    the (8,128) block rule (multiple of 128 or full extent)."""
    Hq = n_kv_heads * n_rep * head_dim
    Hk = n_kv_heads * head_dim
    for g in range(1, n_kv_heads + 1):
        if n_kv_heads % g:
            continue
        kw, qw = g * head_dim, g * n_rep * head_dim
        if (kw % 128 == 0 or kw == Hk) and (qw % 128 == 0 or qw == Hq):
            return g
    return n_kv_heads


def _attention_kernel(q_ref, k_ref, v_ref, o_ref,
                      *, gpb, n_rep, head_dim, scale, seq_len):
    S = seq_len
    q = q_ref[0]          # (S, gpb*n_rep*HD) bf16, RoPE'd, de-interleaved per head
    k = k_ref[0]          # (S, gpb*HD)       bf16
    v = v_ref[0]          # (S, gpb*HD)       bf16

    # Causal mask generated in-kernel (no S x S HBM tensor, no DMA).
    row = jax.lax.broadcasted_iota(jnp.int32, (S, S), 0)
    col = jax.lax.broadcasted_iota(jnp.int32, (S, S), 1)
    mask = jnp.where(col <= row, 0.0, -jnp.inf)

    # TODO(synk): flash-style KV tiling would be needed for long sequences;
    # at these shapes the full S x S scores fit comfortably in VMEM.
    for g in range(gpb):                              # each KV head read once (GQA)
        kg = k[:, g * head_dim:(g + 1) * head_dim]
        vg = v[:, g * head_dim:(g + 1) * head_dim]
        for r in range(n_rep):
            hh = g * n_rep + r
            qh = q[:, hh * head_dim:(hh + 1) * head_dim]
            s = jax.lax.dot_general(qh, kg, (((1,), (1,)), ((), ())),
                                    preferred_element_type=jnp.float32)
            s = s * scale + mask
            s = s - jnp.max(s, axis=-1, keepdims=True)
            p = jnp.exp(s)
            denom = jnp.sum(p, axis=-1, keepdims=True)
            o = jnp.dot(p.astype(v_ref.dtype), vg,
                        preferred_element_type=jnp.float32)
            # Normalize the (S, HD) output instead of the (S, S) probabilities;
            # reciprocal runs on the EUP slot (approx) - effectively free.
            o = o * pl.reciprocal(denom, approx=True)
            # Direct per-head store: bounds live ranges, no concat / transpose.
            o_ref[0, :, hh * head_dim:(hh + 1) * head_dim] = o.astype(o_ref.dtype)


def attention(xq, xk, xv, cfg, batch, seqlen):
    H, KVH, HD = cfg["n_heads"], cfg["n_kv_heads"], cfg["head_dim"]
    n_rep = H // KVH
    gpb = _groups_per_block(KVH, n_rep, HD)
    n_groups = KVH // gpb
    qw, kw = gpb * n_rep * HD, gpb * HD

    q3 = xq.reshape(batch, seqlen, H * HD)
    k3 = xk.reshape(batch, seqlen, KVH * HD)
    v3 = xv.reshape(batch, seqlen, KVH * HD)

    kern = functools.partial(_attention_kernel, gpb=gpb, n_rep=n_rep,
                             head_dim=HD, scale=1.0 / math.sqrt(HD),
                             seq_len=seqlen)

    out = pl.pallas_call(
        kern,
        grid=(batch, n_groups),
        in_specs=[pl.BlockSpec((1, seqlen, qw), lambda b, g: (b, 0, g)),
                  pl.BlockSpec((1, seqlen, kw), lambda b, g: (b, 0, g)),
                  pl.BlockSpec((1, seqlen, kw), lambda b, g: (b, 0, g))],
        out_specs=pl.BlockSpec((1, seqlen, qw), lambda b, g: (b, 0, g)),
        out_shape=jax.ShapeDtypeStruct((batch, seqlen, H * HD), jnp.bfloat16),
        compiler_params=_cparams("parallel", "parallel"),
    )(q3, k3, v3)
    return out.reshape(batch * seqlen, H * HD)


# ---------------------------------------------------------------------------
# Kernel C: wo projection (contraction-tiled) + residual + ffn RMSNorm
# ---------------------------------------------------------------------------

def _wo_res_norm_kernel(attn_ref, wo_ref, x_ref, fnw_ref, h_ref, hn_ref,
                        acc_ref, *, eps):
    k = pl.program_id(1)

    @pl.when(k == 0)
    def _():
        acc_ref[...] = jnp.zeros_like(acc_ref)

    acc_ref[...] += jnp.dot(attn_ref[...], wo_ref[...],
                            preferred_element_type=jnp.float32)

    @pl.when(k == pl.num_programs(1) - 1)
    def _():
        h = x_ref[...].astype(jnp.float32) + acc_ref[...]
        h_ref[...] = h.astype(h_ref.dtype)
        ms = jnp.mean(h * h, axis=-1, keepdims=True)
        hn = h * jax.lax.rsqrt(ms + eps) * fnw_ref[...]       # fused ffn RMSNorm
        hn_ref[...] = hn.astype(hn_ref.dtype)


def wo_residual_norm(attn2d, x2d, wo, ffn_norm_w, eps):
    T, D = x2d.shape
    HqD = attn2d.shape[1]
    tm = _token_tile(T)
    tko = _pick_dim_tile(HqD, (512, 256, 128))

    return pl.pallas_call(
        functools.partial(_wo_res_norm_kernel, eps=eps),
        grid=(T // tm, HqD // tko),
        in_specs=[pl.BlockSpec((tm, tko), lambda i, k: (i, k)),
                  pl.BlockSpec((tko, D), lambda i, k: (k, 0)),
                  pl.BlockSpec((tm, D), lambda i, k: (i, 0)),
                  _weight_spec((1, D), lambda i, k: (0, 0))],
        out_specs=[pl.BlockSpec((tm, D), lambda i, k: (i, 0)),
                   pl.BlockSpec((tm, D), lambda i, k: (i, 0))],
        out_shape=[jax.ShapeDtypeStruct((T, D), jnp.bfloat16),
                   jax.ShapeDtypeStruct((T, D), jnp.bfloat16)],
        scratch_shapes=[pltpu.VMEM((tm, D), jnp.float32)],
        compiler_params=_cparams("parallel", "arbitrary"),
    )(attn2d, wo, x2d, ffn_norm_w)


# ---------------------------------------------------------------------------
# Kernel D: SwiGLU FFN, hidden dim tiled, residual seeded into the accumulator
# ---------------------------------------------------------------------------

def _ffn_kernel(hn_ref, w1_ref, w3_ref, w2_ref, h_ref, o_ref, acc_ref):
    f = pl.program_id(1)

    @pl.when(f == 0)
    def _():
        acc_ref[...] = h_ref[...].astype(jnp.float32)        # residual seed

    hn = hn_ref[...]                                          # bf16
    a1 = jnp.dot(hn, w1_ref[...], preferred_element_type=jnp.float32)
    a3 = jnp.dot(hn, w3_ref[...], preferred_element_type=jnp.float32)
    act = (jax.nn.silu(a1) * a3).astype(w2_ref.dtype)
    acc_ref[...] += jnp.dot(act, w2_ref[...],
                            preferred_element_type=jnp.float32)

    @pl.when(f == pl.num_programs(1) - 1)
    def _():
        o_ref[...] = acc_ref[...].astype(o_ref.dtype)


def ffn_residual(hn2d, h2d, w1, w2, w3):
    T, D = h2d.shape
    F = w1.shape[1]
    tm = _token_tile(T)
    # w1/w3 kept separate (not host-fused) so the hidden dim can be tiled.
    tf = _pick_dim_tile(F, (512, 256, 128))

    return pl.pallas_call(
        _ffn_kernel,
        grid=(T // tm, F // tf),
        in_specs=[pl.BlockSpec((tm, D), lambda i, f: (i, 0)),
                  pl.BlockSpec((D, tf), lambda i, f: (0, f)),
                  pl.BlockSpec((D, tf), lambda i, f: (0, f)),
                  pl.BlockSpec((tf, D), lambda i, f: (f, 0)),
                  pl.BlockSpec((tm, D), lambda i, f: (i, 0))],
        out_specs=pl.BlockSpec((tm, D), lambda i, f: (i, 0)),
        out_shape=jax.ShapeDtypeStruct((T, D), jnp.bfloat16),
        scratch_shapes=[pltpu.VMEM((tm, D), jnp.float32)],
        compiler_params=_cparams("parallel", "arbitrary"),
    )(hn2d, w1, w3, w2, h2d)


# ---------------------------------------------------------------------------
# Final head: RMSNorm kernel + fully tiled matmul with f32 accumulator
# ---------------------------------------------------------------------------

def _rmsnorm_kernel(x_ref, w_ref, o_ref, *, eps):
    x = x_ref[...].astype(jnp.float32)
    ms = jnp.mean(x * x, axis=-1, keepdims=True)
    o_ref[...] = (x * jax.lax.rsqrt(ms + eps) * w_ref[...]).astype(o_ref.dtype)


def rmsnorm(x2d, w, eps):
    T, D = x2d.shape
    tm = _token_tile(T)
    return pl.pallas_call(
        functools.partial(_rmsnorm_kernel, eps=eps),
        grid=(T // tm,),
        in_specs=[pl.BlockSpec((tm, D), lambda i: (i, 0)),
                  _weight_spec((1, D), lambda i: (0, 0))],
        out_specs=pl.BlockSpec((tm, D), lambda i: (i, 0)),
        out_shape=jax.ShapeDtypeStruct((T, D), jnp.bfloat16),
        compiler_params=_cparams("parallel"),
    )(x2d, w)


def _matmul_kernel(x_ref, w_ref, o_ref, acc_ref):
    @pl.when(pl.program_id(2) == 0)
    def _():
        acc_ref[...] = jnp.zeros_like(acc_ref)

    acc_ref[...] += jnp.dot(x_ref[...], w_ref[...],
                            preferred_element_type=jnp.float32)

    @pl.when(pl.program_id(2) == pl.num_programs(2) - 1)
    def _():
        o_ref[...] = acc_ref[...].astype(o_ref.dtype)


def matmul_tiled(x, w, out_dtype=jnp.float32):
    """Tiled (M, N, K) matmul with VMEM f32 accumulator; used for the vocab
    head (bf16 inputs, lane-dense output blocks, f32 logits per the module)."""
    M, K = x.shape
    K2, N = w.shape
    assert K == K2
    tm = _token_tile(M)
    tn = _pick_dim_tile(N, (1024, 512, 256, 128))
    tk = _pick_dim_tile(K, (512, 256, 128))
    return pl.pallas_call(
        _matmul_kernel,
        grid=(M // tm, N // tn, K // tk),
        in_specs=[pl.BlockSpec((tm, tk), lambda i, j, k: (i, k)),
                  pl.BlockSpec((tk, tn), lambda i, j, k: (k, j))],
        out_specs=pl.BlockSpec((tm, tn), lambda i, j, k: (i, j)),
        out_shape=jax.ShapeDtypeStruct((M, N), out_dtype),
        scratch_shapes=[pltpu.VMEM((tm, tn), jnp.float32)],
        compiler_params=_cparams("parallel", "parallel", "arbitrary"),
    )(x, w)


# ---------------------------------------------------------------------------
# RoPE tables and host-side weight-layout / dtype preparation
# ---------------------------------------------------------------------------

def precompute_freqs(head_dim, end, theta):
    freqs = 1.0 / theta ** (
        jnp.arange(0, head_dim, 2)[: head_dim // 2].astype(jnp.float32) / head_dim)
    t = jnp.arange(end, dtype=jnp.float32)
    freqs = jnp.outer(t, freqs)                     # (end, head_dim // 2)
    return jnp.cos(freqs), jnp.sin(freqs)


def _rope_tables(cos_f, sin_f, batch):
    """(B*S, head_dim) cos / signed-sin tables in the de-interleaved per-head
    layout; broadcast across heads happens inside the QKV kernel."""
    cos_hd = jnp.concatenate([cos_f, cos_f], axis=-1)    # (S, HD)
    sin_hd = jnp.concatenate([-sin_f, sin_f], axis=-1)   # (S, HD), sign baked in
    return jnp.tile(cos_hd, (batch, 1)), jnp.tile(sin_hd, (batch, 1))


def _deinterleave_cols(w, n_heads, head_dim):
    """Permute wq/wk columns so each head's dims are [x0,x2,.. | x1,x3,..]."""
    half = head_dim // 2
    perm = jnp.concatenate([jnp.arange(half) * 2, jnp.arange(half) * 2 + 1])
    cols = (jnp.arange(n_heads)[:, None] * head_dim + perm[None, :]).reshape(-1)
    return w[:, cols]


def quantize_params(params):
    """bf16-round-trip the reference-layout weights (the storage precision the
    kernels use) so the f32 reference and the Pallas path share identical
    parameter values; norm weights and rope tables stay exact f32."""
    def q(a):
        return a.astype(jnp.bfloat16).astype(jnp.float32)

    out = dict(params)
    out["tok_embeddings"] = q(params["tok_embeddings"])
    out["output"] = q(params["output"])
    out["layers"] = [
        {k: (q(v) if k in ("wq", "wk", "wv", "wo", "w1", "w2", "w3") else v)
         for k, v in lp.items()}
        for lp in params["layers"]
    ]
    return out


def prepare_params(params, cfg):
    """One-time host-side transformation into the kernel layout: wq/wk columns
    de-interleaved, [wq|wk|wv] fused, all big weights cast to bfloat16."""
    H, KVH, HD = cfg["n_heads"], cfg["n_kv_heads"], cfg["head_dim"]
    bf16 = jnp.bfloat16
    out = {
        "tok_embeddings": params["tok_embeddings"].astype(bf16),
        "output": params["output"].astype(bf16),
        "norm": params["norm"],
        "cos": params["cos"],
        "sin": params["sin"],
    }
    layers = []
    for lp in params["layers"]:
        wq = _deinterleave_cols(lp["wq"], H, HD)
        wk = _deinterleave_cols(lp["wk"], KVH, HD)
        layers.append({
            "wqkv": jnp.concatenate([wq, wk, lp["wv"]], axis=1).astype(bf16),
            "wo": lp["wo"].astype(bf16),
            "w1": lp["w1"].astype(bf16),
            "w2": lp["w2"].astype(bf16),
            "w3": lp["w3"].astype(bf16),
            "attn_norm": lp["attn_norm"],
            "ffn_norm": lp["ffn_norm"],
        })
    out["layers"] = layers
    return out


# ---------------------------------------------------------------------------
# Model forward (Pallas path)
# ---------------------------------------------------------------------------

def transformer_forward(tokens, params, cfg, start_pos=0):
    # TODO(synk): KV-cache / start_pos>0 decode path not implemented.
    assert start_pos == 0
    B, S = tokens.shape
    D = cfg["dim"]

    # TODO(synk): token-embedding gather kept in plain JAX (data-dependent gather).
    h = params["tok_embeddings"][tokens].reshape(B * S, D)   # bf16 residual stream

    cos_f = params["cos"][start_pos:start_pos + S]
    sin_f = params["sin"][start_pos:start_pos + S]
    cos_hd, sin_hd = _rope_tables(cos_f, sin_f, B)

    for lp in params["layers"]:
        xq, xk, xv = attn_input_proj(h, lp["attn_norm"], lp["wqkv"],
                                     cos_hd, sin_hd, cfg)
        attn = attention(xq, xk, xv, cfg, B, S)
        h, hn = wo_residual_norm(attn, h, lp["wo"], lp["ffn_norm"],
                                 cfg["norm_eps"])
        h = ffn_residual(hn, h, lp["w1"], lp["w2"], lp["w3"])

    hn = rmsnorm(h, params["norm"], cfg["norm_eps"])
    logits = matmul_tiled(hn, params["output"], out_dtype=jnp.float32)
    # The reference returns the float32 pre-softmax head output.
    return logits.reshape(B, S, -1)


# ---------------------------------------------------------------------------
# Plain-JAX reference (mirrors the PyTorch module) for numerical validation
# ---------------------------------------------------------------------------

def reference_forward(tokens, params, cfg, start_pos=0):
    P = jax.lax.Precision.HIGHEST
    B, S = tokens.shape
    D, H, KVH, HD = cfg["dim"], cfg["n_heads"], cfg["n_kv_heads"], cfg["head_dim"]
    n_rep = H // KVH
    eps = cfg["norm_eps"]

    def rms(x, w):
        return x * jax.lax.rsqrt(jnp.mean(x * x, axis=-1, keepdims=True) + eps) * w

    h = params["tok_embeddings"][tokens]
    cos = params["cos"][start_pos:start_pos + S]
    sin = params["sin"][start_pos:start_pos + S]

    def rope(x):  # interleaved (view_as_complex) formulation
        xr = x.reshape(*x.shape[:-1], HD // 2, 2)
        x0, x1 = xr[..., 0], xr[..., 1]
        c, s = cos[None, :, None, :], sin[None, :, None, :]
        return jnp.stack([x0 * c - x1 * s, x0 * s + x1 * c], axis=-1).reshape(x.shape)

    mask = jnp.triu(jnp.full((S, S), -jnp.inf, jnp.float32), k=1)

    for lp in params["layers"]:
        xn2 = rms(h, lp["attn_norm"]).reshape(B * S, D)
        xq = jnp.dot(xn2, lp["wq"], precision=P).reshape(B, S, H, HD)
        xk = jnp.dot(xn2, lp["wk"], precision=P).reshape(B, S, KVH, HD)
        xv = jnp.dot(xn2, lp["wv"], precision=P).reshape(B, S, KVH, HD)
        xq, xk = rope(xq), rope(xk)
        keys = jnp.repeat(xk, n_rep, axis=2).transpose(0, 2, 1, 3)
        vals = jnp.repeat(xv, n_rep, axis=2).transpose(0, 2, 1, 3)
        q = xq.transpose(0, 2, 1, 3)
        scores = jnp.einsum("bhqd,bhkd->bhqk", q, keys, precision=P) / math.sqrt(HD)
        p = jax.nn.softmax(scores + mask[None, None], axis=-1)
        out = jnp.einsum("bhqk,bhkd->bhqd", p, vals, precision=P)
        out = out.transpose(0, 2, 1, 3).reshape(B * S, H * HD)
        h = h + jnp.dot(out, lp["wo"], precision=P).reshape(B, S, D)
        hn2 = rms(h, lp["ffn_norm"]).reshape(B * S, D)
        a1 = jnp.dot(hn2, lp["w1"], precision=P)
        a3 = jnp.dot(hn2, lp["w3"], precision=P)
        h = h + jnp.dot(jax.nn.silu(a1) * a3, lp["w2"], precision=P).reshape(B, S, D)

    hn = rms(h, params["norm"]).reshape(B * S, D)
    return jnp.dot(hn, params["output"], precision=P).reshape(B, S, -1)


# ---------------------------------------------------------------------------
# Deterministic parameter construction (reference layout, f32)
# ---------------------------------------------------------------------------

def ffn_hidden_dim(dim, multiple_of):
    hidden = int(2 * (4 * dim) / 3)
    return multiple_of * ((hidden + multiple_of - 1) // multiple_of)


def init_params(key, cfg):
    D, H, KVH, HD = cfg["dim"], cfg["n_heads"], cfg["n_kv_heads"], cfg["head_dim"]
    V = cfg["vocab_size"]
    F = ffn_hidden_dim(D, cfg["multiple_of"])

    def lin(k, fan_in, fan_out):
        return jax.random.normal(k, (fan_in, fan_out), jnp.float32) / math.sqrt(fan_in)

    keys = jax.random.split(key, 2 + cfg["n_layers"])
    params = {
        "tok_embeddings": jax.random.normal(keys[0], (V, D), jnp.float32),
        "output": lin(keys[1], D, V),
        "norm": jnp.ones((1, D), jnp.float32),
    }
    layers = []
    for li in range(cfg["n_layers"]):
        lk = jax.random.split(keys[2 + li], 7)
        layers.append({
            "wq": lin(lk[0], D, H * HD),
            "wk": lin(lk[1], D, KVH * HD),
            "wv": lin(lk[2], D, KVH * HD),
            "wo": lin(lk[3], H * HD, D),
            "w1": lin(lk[4], D, F),
            "w2": lin(lk[5], F, D),
            "w3": lin(lk[6], D, F),
            "attn_norm": jnp.ones((1, D), jnp.float32),
            "ffn_norm": jnp.ones((1, D), jnp.float32),
        })
    params["layers"] = layers
    cos, sin = precompute_freqs(HD, cfg["max_seq_len"] * 2, cfg["rope_theta"])
    params["cos"] = cos
    params["sin"] = sin
    return params


# ---------------------------------------------------------------------------
# Main
# ---------------------------------------------------------------------------

if __name__ == "__main__":
    cfg = dict(
        dim=64,
        n_layers=2,
        n_heads=4,
        n_kv_heads=2,
        head_dim=64 // 4,
        vocab_size=128,
        multiple_of=32,
        norm_eps=1e-5,
        rope_theta=500000.0,
        max_seq_len=16,
    )

    _detect_buffered_support()

    key = jax.random.PRNGKey(0)
    pkey, tkey = jax.random.split(key)
    raw_params = init_params(pkey, cfg)              # f32, reference layout
    ref_params = quantize_params(raw_params)         # bf16-representable values, f32
    kern_params = prepare_params(ref_params, cfg)    # kernel layout, bf16 storage

    batch, seqlen = 2, 8
    tokens = jax.random.randint(tkey, (batch, seqlen), 0, cfg["vocab_size"],
                                dtype=jnp.int32)

    fwd = jax.jit(functools.partial(transformer_forward, cfg=cfg))
    logits = fwd(tokens, kern_params)
    jax.block_until_ready(logits)

    assert logits.shape == (batch, seqlen, cfg["vocab_size"])
    assert logits.dtype == jnp.float32
    assert bool(jnp.all(jnp.isfinite(logits)))

    # Validate against a plain-JAX (f32) implementation of the PyTorch module
    # using the same bf16-stored parameter values; remaining differences are the
    # kernels' bf16 activation storage / approx reciprocal, hence the 5e-2 tol.
    ref = jax.jit(functools.partial(reference_forward, cfg=cfg))(tokens, ref_params)
    assert bool(jnp.allclose(logits, ref, rtol=5e-2, atol=5e-2))

    print("KERNEL_OK")
</pallas_src>

<mosaic_0001>
module attributes {stable_mosaic.version = 11 : i64} {
  func.func @copy_kernel(%arg0: i32, %arg1: memref<8x128xf32, #tpu.memory_space<vmem>>, %arg2: memref<8x128xf32, #tpu.memory_space<vmem>>) attributes {dimension_semantics = [#tpu.dimension_semantics<arbitrary>], iteration_bounds = array<i64: 2>, scalar_prefetch = 0 : i64, scratch_operands = 0 : i64, tpu.core_type = #tpu.core_type<tc>, window_params = [{pipeline_mode = #tpu.pipeline_mode<synchronous>, transform_indices = @transform_0, window_bounds = array<i64: 8, 128>}, {transform_indices = @transform_1, window_bounds = array<i64: 8, 128>}]} {
    %c0 = arith.constant 0 : index
    %c0_0 = arith.constant 0 : index
    %0 = vector.load %arg1[%c0, %c0_0] : memref<8x128xf32, #tpu.memory_space<vmem>>, vector<8x128xf32>
    %c0_1 = arith.constant 0 : index
    %c0_2 = arith.constant 0 : index
    %1 = vector.load %arg2[%c0_1, %c0_2] : memref<8x128xf32, #tpu.memory_space<vmem>>, vector<8x128xf32>
    tpu.vector_store %arg2[%c0_1, %c0_2], %0 {strides = array<i32>} : memref<8x128xf32, #tpu.memory_space<vmem>>, vector<8x128xf32>,
    return
  }
  func.func @transform_0(%arg0: i32) -> (i32, i32) {
    %c0_i32 = arith.constant 0 : i32
    %c0_i32_0 = arith.constant 0 : i32
    %c0_i32_1 = arith.constant 0 : i32
    return %c0_i32, %c0_i32_0 : i32, i32
  }
  func.func @transform_1(%arg0: i32) -> (i32, i32) {
    %c0_i32 = arith.constant 0 : i32
    %c0_i32_0 = arith.constant 0 : i32
    return %arg0, %c0_i32 : i32, i32
  }
}

module attributes {stable_mosaic.version = 11 : i64} {
  func.func @_attention_kernel(%arg0: i32, %arg1: i32, %arg2: memref<1x8x64xbf16, #tpu.memory_space<vmem>>, %arg3: memref<1x8x32xbf16, #tpu.memory_space<vmem>>, %arg4: memref<1x8x32xbf16, #tpu.memory_space<vmem>>, %arg5: memref<1x8x64xbf16, #tpu.memory_space<vmem>>) attributes {dimension_semantics = [#tpu.dimension_semantics<parallel>, #tpu.dimension_semantics<parallel>], iteration_bounds = array<i64: 2, 1>, scalar_prefetch = 0 : i64, scratch_operands = 0 : i64, tpu.core_type = #tpu.core_type<tc>, window_params = [{transform_indices = @transform_0, window_bounds = array<i64: 1, 8, 64>}, {transform_indices = @transform_1, window_bounds = array<i64: 1, 8, 32>}, {transform_indices = @transform_2, window_bounds = array<i64: 1, 8, 32>}, {transform_indices = @transform_3, window_bounds = array<i64: 1, 8, 64>}]} {
    %c0 = arith.constant 0 : index
    %c0_0 = arith.constant 0 : index
    %c0_1 = arith.constant 0 : index
    %0 = vector.load %arg2[%c0, %c0_0, %c0_1] : memref<1x8x64xbf16, #tpu.memory_space<vmem>>, vector<1x8x64xbf16>
    %1 = vector.shape_cast %0 : vector<1x8x64xbf16> to vector<8x64xbf16>
    %c0_2 = arith.constant 0 : index
    %c0_3 = arith.constant 0 : index
    %c0_4 = arith.constant 0 : index
    %2 = vector.load %arg3[%c0_2, %c0_3, %c0_4] : memref<1x8x32xbf16, #tpu.memory_space<vmem>>, vector<1x8x32xbf16>
    %3 = vector.shape_cast %2 : vector<1x8x32xbf16> to vector<8x32xbf16>
    %c0_5 = arith.constant 0 : index
    %c0_6 = arith.constant 0 : index
    %c0_7 = arith.constant 0 : index
    %4 = vector.load %arg4[%c0_5, %c0_6, %c0_7] : memref<1x8x32xbf16, #tpu.memory_space<vmem>>, vector<1x8x32xbf16>
    %5 = vector.shape_cast %4 : vector<1x8x32xbf16> to vector<8x32xbf16>
    %6 = tpu.iota {dimensions = array<i32: 0>} : vector<8x8xi32>
    %7 = tpu.iota {dimensions = array<i32: 1>} : vector<8x8xi32>
    %8 = arith.cmpi sle, %7, %6 : vector<8x8xi32>
    %cst = arith.constant 0.000000e+00 : f32
    %cst_8 = arith.constant 0xFF800000 : f32
    %9 = vector.broadcast %cst : f32 to vector<8x8xf32>
    %10 = vector.broadcast %cst_8 : f32 to vector<8x8xf32>
    %11 = arith.select %8, %9, %10 : vector<8x8xi1>, vector<8x8xf32>
    %12 = vector.extract_strided_slice %3 {offsets = [0, 0], sizes = [8, 16], strides = [1, 1]} : vector<8x32xbf16> to vector<8x16xbf16>
    %13 = vector.extract_strided_slice %5 {offsets = [0, 0], sizes = [8, 16], strides = [1, 1]} : vector<8x32xbf16> to vector<8x16xbf16>
    %14 = vector.extract_strided_slice %1 {offsets = [0, 0], sizes = [8, 16], strides = [1, 1]} : vector<8x64xbf16> to vector<8x16xbf16>
    %cst_9 = arith.constant dense<0.000000e+00> : vector<8x8xf32>
    %15 = tpu.matmul %14, %12, %cst_9 {dimension_numbers = #tpu.dot_dimension_numbers<[1], [1], [0], [0], [0, 0, 1, 0], [], []>} : vector<8x16xbf16>, vector<8x16xbf16>, vector<8x8xf32> -> vector<8x8xf32>
    %cst_10 = arith.constant 2.500000e-01 : f32
    %16 = vector.broadcast %cst_10 : f32 to vector<8x8xf32>
    %17 = arith.mulf %15, %16 : vector<8x8xf32>
    %18 = arith.addf %17, %11 : vector<8x8xf32>
    %cst_11 = arith.constant dense<0xFF800000> : vector<8xf32>
    %19 = vector.multi_reduction <maximumf>, %18, %cst_11 [1] : vector<8x8xf32> to vector<8xf32>
    %20 = vector.shape_cast %19 : vector<8xf32> to vector<8x1xf32>
    %21 = vector.broadcast %20 : vector<8x1xf32> to vector<8x8xf32>
    %22 = arith.subf %18, %21 : vector<8x8xf32>
    %23 = math.exp %22 : vector<8x8xf32>
    %cst_12 = arith.constant dense<0.000000e+00> : vector<8xf32>
    %24 = vector.multi_reduction <add>, %23, %cst_12 [1] : vector<8x8xf32> to vector<8xf32>
    %25 = vector.shape_cast %24 : vector<8xf32> to vector<8x1xf32>
    %26 = arith.truncf %23 : vector<8x8xf32> to vector<8x8xbf16>
    %cst_13 = arith.constant dense<0.000000e+00> : vector<8x16xf32>
    %27 = tpu.matmul %26, %13, %cst_13 {dimension_numbers = #tpu.dot_dimension_numbers<[1], [0], [0], [1], [0, 0, 1, 1], [], []>} : vector<8x8xbf16>, vector<8x16xbf16>, vector<8x16xf32> -> vector<8x16xf32>
    %28 = tpu.reciprocal %25 {approx = true} : vector<8x1xf32> -> vector<8x1xf32>
    %29 = vector.broadcast %28 : vector<8x1xf32> to vector<8x16xf32>
    %30 = arith.mulf %27, %29 : vector<8x16xf32>
    %31 = arith.truncf %30 : vector<8x16xf32> to vector<8x16xbf16>
    %c0_14 = arith.constant 0 : index
    %c0_15 = arith.constant 0 : index
    %c0_16 = arith.constant 0 : index
    %32 = vector.load %arg5[%c0_14, %c0_15, %c0_16] : memref<1x8x64xbf16, #tpu.memory_space<vmem>>, vector<1x8x16xbf16>
    %33 = vector.shape_cast %32 : vector<1x8x16xbf16> to vector<8x16xbf16>
    %34 = vector.shape_cast %31 : vector<8x16xbf16> to vector<1x8x16xbf16>
    tpu.vector_store %arg5[%c0_14, %c0_15, %c0_16], %34 {strides = array<i32>} : memref<1x8x64xbf16, #tpu.memory_space<vmem>>, vector<1x8x16xbf16>,
    %35 = vector.extract_strided_slice %1 {offsets = [0, 16], sizes = [8, 16], strides = [1, 1]} : vector<8x64xbf16> to vector<8x16xbf16>
    %cst_17 = arith.constant dense<0.000000e+00> : vector<8x8xf32>
    %36 = tpu.matmul %35, %12, %cst_17 {dimension_numbers = #tpu.dot_dimension_numbers<[1], [1], [0], [0], [0, 0, 1, 0], [], []>} : vector<8x16xbf16>, vector<8x16xbf16>, vector<8x8xf32> -> vector<8x8xf32>
    %cst_18 = arith.constant 2.500000e-01 : f32
    %37 = vector.broadcast %cst_18 : f32 to vector<8x8xf32>
    %38 = arith.mulf %36, %37 : vector<8x8xf32>
    %39 = arith.addf %38, %11 : vector<8x8xf32>
    %cst_19 = arith.constant dense<0xFF800000> : vector<8xf32>
    %40 = vector.multi_reduction <maximumf>, %39, %cst_19 [1] : vector<8x8xf32> to vector<8xf32>
    %41 = vector.shape_cast %40 : vector<8xf32> to vector<8x1xf32>
    %42 = vector.broadcast %41 : vector<8x1xf32> to vector<8x8xf32>
    %43 = arith.subf %39, %42 : vector<8x8xf32>
    %44 = math.exp %43 : vector<8x8xf32>
    %cst_20 = arith.constant dense<0.000000e+00> : vector<8xf32>
    %45 = vector.multi_reduction <add>, %44, %cst_20 [1] : vector<8x8xf32> to vector<8xf32>
    %46 = vector.shape_cast %45 : vector<8xf32> to vector<8x1xf32>
    %47 = arith.truncf %44 : vector<8x8xf32> to vector<8x8xbf16>
    %cst_21 = arith.constant dense<0.000000e+00> : vector<8x16xf32>
    %48 = tpu.matmul %47, %13, %cst_21 {dimension_numbers = #tpu.dot_dimension_numbers<[1], [0], [0], [1], [0, 0, 1, 1], [], []>} : vector<8x8xbf16>, vector<8x16xbf16>, vector<8x16xf32> -> vector<8x16xf32>
    %49 = tpu.reciprocal %46 {approx = true} : vector<8x1xf32> -> vector<8x1xf32>
    %50 = vector.broadcast %49 : vector<8x1xf32> to vector<8x16xf32>
    %51 = arith.mulf %48, %50 : vector<8x16xf32>
    %52 = arith.truncf %51 : vector<8x16xf32> to vector<8x16xbf16>
    %c0_22 = arith.constant 0 : index
    %c0_23 = arith.constant 0 : index
    %c16 = arith.constant 16 : index
    %53 = vector.load %arg5[%c0_22, %c0_23, %c16] : memref<1x8x64xbf16, #tpu.memory_space<vmem>>, vector<1x8x16xbf16>
    %54 = vector.shape_cast %53 : vector<1x8x16xbf16> to vector<8x16xbf16>
    %55 = vector.shape_cast %52 : vector<8x16xbf16> to vector<1x8x16xbf16>
    tpu.vector_store %arg5[%c0_22, %c0_23, %c16], %55 {strides = array<i32>} : memref<1x8x64xbf16, #tpu.memory_space<vmem>>, vector<1x8x16xbf16>,
    %56 = vector.extract_strided_slice %3 {offsets = [0, 16], sizes = [8, 16], strides = [1, 1]} : vector<8x32xbf16> to vector<8x16xbf16>
    %57 = vector.extract_strided_slice %5 {offsets = [0, 16], sizes = [8, 16], strides = [1, 1]} : vector<8x32xbf16> to vector<8x16xbf16>
    %58 = vector.extract_strided_slice %1 {offsets = [0, 32], sizes = [8, 16], strides = [1, 1]} : vector<8x64xbf16> to vector<8x16xbf16>
    %cst_24 = arith.constant dense<0.000000e+00> : vector<8x8xf32>
    %59 = tpu.matmul %58, %56, %cst_24 {dimension_numbers = #tpu.dot_dimension_numbers<[1], [1], [0], [0], [0, 0, 1, 0], [], []>} : vector<8x16xbf16>, vector<8x16xbf16>, vector<8x8xf32> -> vector<8x8xf32>
    %cst_25 = arith.constant 2.500000e-01 : f32
    %60 = vector.broadcast %cst_25 : f32 to vector<8x8xf32>
    %61 = arith.mulf %59, %60 : vector<8x8xf32>
    %62 = arith.addf %61, %11 : vector<8x8xf32>
    %cst_26 = arith.constant dense<0xFF800000> : vector<8xf32>
    %63 = vector.multi_reduction <maximumf>, %62, %cst_26 [1] : vector<8x8xf32> to vector<8xf32>
    %64 = vector.shape_cast %63 : vector<8xf32> to vector<8x1xf32>
    %65 = vector.broadcast %64 : vector<8x1xf32> to vector<8x8xf32>
    %66 = arith.subf %62, %65 : vector<8x8xf32>
    %67 = math.exp %66 : vector<8x8xf32>
    %cst_27 = arith.constant dense<0.000000e+00> : vector<8xf32>
    %68 = vector.multi_reduction <add>, %67, %cst_27 [1] : vector<8x8xf32> to vector<8xf32>
    %69 = vector.shape_cast %68 : vector<8xf32> to vector<8x1xf32>
    %70 = arith.truncf %67 : vector<8x8xf32> to vector<8x8xbf16>
    %cst_28 = arith.constant dense<0.000000e+00> : vector<8x16xf32>
    %71 = tpu.matmul %70, %57, %cst_28 {dimension_numbers = #tpu.dot_dimension_numbers<[1], [0], [0], [1], [0, 0, 1, 1], [], []>} : vector<8x8xbf16>, vector<8x16xbf16>, vector<8x16xf32> -> vector<8x16xf32>
    %72 = tpu.reciprocal %69 {approx = true} : vector<8x1xf32> -> vector<8x1xf32>
    %73 = vector.broadcast %72 : vector<8x1xf32> to vector<8x16xf32>
    %74 = arith.mulf %71, %73 : vector<8x16xf32>
    %75 = arith.truncf %74 : vector<8x16xf32> to vector<8x16xbf16>
    %c0_29 = arith.constant 0 : index
    %c0_30 = arith.constant 0 : index
    %c32 = arith.constant 32 : index
    %76 = vector.load %arg5[%c0_29, %c0_30, %c32] : memref<1x8x64xbf16, #tpu.memory_space<vmem>>, vector<1x8x16xbf16>
    %77 = vector.shape_cast %76 : vector<1x8x16xbf16> to vector<8x16xbf16>
    %78 = vector.shape_cast %75 : vector<8x16xbf16> to vector<1x8x16xbf16>
    tpu.vector_store %arg5[%c0_29, %c0_30, %c32], %78 {strides = array<i32>} : memref<1x8x64xbf16, #tpu.memory_space<vmem>>, vector<1x8x16xbf16>,
    %79 = vector.extract_strided_slice %1 {offsets = [0, 48], sizes = [8, 16], strides = [1, 1]} : vector<8x64xbf16> to vector<8x16xbf16>
    %cst_31 = arith.constant dense<0.000000e+00> : vector<8x8xf32>
    %80 = tpu.matmul %79, %56, %cst_31 {dimension_numbers = #tpu.dot_dimension_numbers<[1], [1], [0], [0], [0, 0, 1, 0], [], []>} : vector<8x16xbf16>, vector<8x16xbf16>, vector<8x8xf32> -> vector<8x8xf32>
    %cst_32 = arith.constant 2.500000e-01 : f32
    %81 = vector.broadcast %cst_32 : f32 to vector<8x8xf32>
    %82 = arith.mulf %80, %81 : vector<8x8xf32>
    %83 = arith.addf %82, %11 : vector<8x8xf32>
    %cst_33 = arith.constant dense<0xFF800000> : vector<8xf32>
    %84 = vector.multi_reduction <maximumf>, %83, %cst_33 [1] : vector<8x8xf32> to vector<8xf32>
    %85 = vector.shape_cast %84 : vector<8xf32> to vector<8x1xf32>
    %86 = vector.broadcast %85 : vector<8x1xf32> to vector<8x8xf32>
    %87 = arith.subf %83, %86 : vector<8x8xf32>
    %88 = math.exp %87 : vector<8x8xf32>
    %cst_34 = arith.constant dense<0.000000e+00> : vector<8xf32>
    %89 = vector.multi_reduction <add>, %88, %cst_34 [1] : vector<8x8xf32> to vector<8xf32>
    %90 = vector.shape_cast %89 : vector<8xf32> to vector<8x1xf32>
    %91 = arith.truncf %88 : vector<8x8xf32> to vector<8x8xbf16>
    %cst_35 = arith.constant dense<0.000000e+00> : vector<8x16xf32>
    %92 = tpu.matmul %91, %57, %cst_35 {dimension_numbers = #tpu.dot_dimension_numbers<[1], [0], [0], [1], [0, 0, 1, 1], [], []>} : vector<8x8xbf16>, vector<8x16xbf16>, vector<8x16xf32> -> vector<8x16xf32>
    %93 = tpu.reciprocal %90 {approx = true} : vector<8x1xf32> -> vector<8x1xf32>
    %94 = vector.broadcast %93 : vector<8x1xf32> to vector<8x16xf32>
    %95 = arith.mulf %92, %94 : vector<8x16xf32>
    %96 = arith.truncf %95 : vector<8x16xf32> to vector<8x16xbf16>
    %c0_36 = arith.constant 0 : index
    %c0_37 = arith.constant 0 : index
    %c48 = arith.constant 48 : index
    %97 = vector.load %arg5[%c0_36, %c0_37, %c48] : memref<1x8x64xbf16, #tpu.memory_space<vmem>>, vector<1x8x16xbf16>
    %98 = vector.shape_cast %97 : vector<1x8x16xbf16> to vector<8x16xbf16>
    %99 = vector.shape_cast %96 : vector<8x16xbf16> to vector<1x8x16xbf16>
    tpu.vector_store %arg5[%c0_36, %c0_37, %c48], %99 {strides = array<i32>} : memref<1x8x64xbf16, #tpu.memory_space<vmem>>, vector<1x8x16xbf16>,
    return
  }
  func.func @transform_0(%arg0: i32, %arg1: i32) -> (i32, i32, i32) {
    %c0_i32 = arith.constant 0 : i32
    %c0_i32_0 = arith.constant 0 : i32
    return %arg0, %c0_i32, %arg1 : i32, i32, i32
  }
  func.func @transform_1(%arg0: i32, %arg1: i32) -> (i32, i32, i32) {
    %c0_i32 = arith.constant 0 : i32
    %c0_i32_0 = arith.constant 0 : i32
    return %arg0, %c0_i32, %arg1 : i32, i32, i32
  }
  func.func @transform_2(%arg0: i32, %arg1: i32) -> (i32, i32, i32) {
    %c0_i32 = arith.constant 0 : i32
    %c0_i32_0 = arith.constant 0 : i32
    return %arg0, %c0_i32, %arg1 : i32, i32, i32
  }
  func.func @transform_3(%arg0: i32, %arg1: i32) -> (i32, i32, i32) {
    %c0_i32 = arith.constant 0 : i32
    %c0_i32_0 = arith.constant 0 : i32
    return %arg0, %c0_i32, %arg1 : i32, i32, i32
  }
}

module attributes {stable_mosaic.version = 11 : i64} {
  func.func @_qkv_rope_kernel(%arg0: i32, %arg1: memref<16x64xbf16, #tpu.memory_space<vmem>>, %arg2: memref<1x64xf32, #tpu.memory_space<vmem>>, %arg3: memref<64x128xbf16, #tpu.memory_space<vmem>>, %arg4: memref<16x16xf32, #tpu.memory_space<vmem>>, %arg5: memref<16x16xf32, #tpu.memory_space<vmem>>, %arg6: memref<16x64xbf16, #tpu.memory_space<vmem>>, %arg7: memref<16x32xbf16, #tpu.memory_space<vmem>>, %arg8: memref<16x32xbf16, #tpu.memory_space<vmem>>) attributes {dimension_semantics = [#tpu.dimension_semantics<parallel>], iteration_bounds = array<i64: 1>, scalar_prefetch = 0 : i64, scratch_operands = 0 : i64, tpu.core_type = #tpu.core_type<tc>, window_params = [{transform_indices = @transform_0, window_bounds = array<i64: 16, 64>}, {pipeline_mode = #tpu.pipeline_mode<synchronous>, transform_indices = @transform_1, window_bounds = array<i64: 1, 64>}, {pipeline_mode = #tpu.pipeline_mode<synchronous>, transform_indices = @transform_2, window_bounds = array<i64: 64, 128>}, {transform_indices = @transform_3, window_bounds = array<i64: 16, 16>}, {transform_indices = @transform_4, window_bounds = array<i64: 16, 16>}, {transform_indices = @transform_5, window_bounds = array<i64: 16, 64>}, {transform_indices = @transform_6, window_bounds = array<i64: 16, 32>}, {transform_indices = @transform_7, window_bounds = array<i64: 16, 32>}]} {
    %c0 = arith.constant 0 : index
    %c0_0 = arith.constant 0 : index
    %0 = vector.load %arg1[%c0, %c0_0] : memref<16x64xbf16, #tpu.memory_space<vmem>>, vector<16x64xbf16>
    %1 = arith.extf %0 : vector<16x64xbf16> to vector<16x64xf32>
    %2 = arith.mulf %1, %1 : vector<16x64xf32>
    %cst = arith.constant dense<0.000000e+00> : vector<16xf32>
    %3 = vector.multi_reduction <add>, %2, %cst [1] : vector<16x64xf32> to vector<16xf32>
    %4 = vector.shape_cast %3 : vector<16xf32> to vector<16x1xf32>
    %cst_1 = arith.constant 6.400000e+01 : f32
    %5 = vector.broadcast %cst_1 : f32 to vector<16x1xf32>
    %6 = arith.divf %4, %5 : vector<16x1xf32>
    %cst_2 = arith.constant 9.99999974E-6 : f32
    %7 = vector.broadcast %cst_2 : f32 to vector<16x1xf32>
    %8 = arith.addf %6, %7 : vector<16x1xf32>
    %9 = math.rsqrt %8 : vector<16x1xf32>
    %10 = vector.broadcast %9 : vector<16x1xf32> to vector<16x64xf32>
    %11 = arith.mulf %1, %10 : vector<16x64xf32>
    %c0_3 = arith.constant 0 : index
    %c0_4 = arith.constant 0 : index
    %12 = vector.load %arg2[%c0_3, %c0_4] : memref<1x64xf32, #tpu.memory_space<vmem>>, vector<1x64xf32>
    %13 = vector.broadcast %12 : vector<1x64xf32> to vector<16x64xf32>
    %14 = arith.mulf %11, %13 : vector<16x64xf32>
    %15 = arith.truncf %14 : vector<16x64xf32> to vector<16x64xbf16>
    %c0_5 = arith.constant 0 : index
    %c0_6 = arith.constant 0 : index
    %16 = vector.load %arg3[%c0_5, %c0_6] : memref<64x128xbf16, #tpu.memory_space<vmem>>, vector<64x128xbf16>
    %cst_7 = arith.constant dense<0.000000e+00> : vector<16x128xf32>
    %17 = tpu.matmul %15, %16, %cst_7 {dimension_numbers = #tpu.dot_dimension_numbers<[1], [0], [0], [1], [0, 0, 1, 1], [], []>} : vector<16x64xbf16>, vector<64x128xbf16>, vector<16x128xf32> -> vector<16x128xf32>
    %18 = vector.extract_strided_slice %17 {offsets = [0, 0], sizes = [16, 64], strides = [1, 1]} : vector<16x128xf32> to vector<16x64xf32>
    %19 = vector.extract_strided_slice %17 {offsets = [0, 64], sizes = [16, 32], strides = [1, 1]} : vector<16x128xf32> to vector<16x32xf32>
    %20 = vector.extract_strided_slice %17 {offsets = [0, 96], sizes = [16, 32], strides = [1, 1]} : vector<16x128xf32> to vector<16x32xf32>
    %c0_8 = arith.constant 0 : index
    %c0_9 = arith.constant 0 : index
    %21 = vector.load %arg4[%c0_8, %c0_9] : memref<16x16xf32, #tpu.memory_space<vmem>>, vector<16x16xf32>
    %c0_10 = arith.constant 0 : index
    %c0_11 = arith.constant 0 : index
    %22 = vector.load %arg5[%c0_10, %c0_11] : memref<16x16xf32, #tpu.memory_space<vmem>>, vector<16x16xf32>
    %23 = tpu.concatenate %21, %21, %21, %21 in 1 : vector<16x16xf32>, vector<16x16xf32>, vector<16x16xf32>, vector<16x16xf32> -> vector<16x64xf32>
    %24 = tpu.concatenate %22, %22, %22, %22 in 1 : vector<16x16xf32>, vector<16x16xf32>, vector<16x16xf32>, vector<16x16xf32> -> vector<16x64xf32>
    %25 = vector.extract_strided_slice %18 {offsets = [0, 8], sizes = [16, 8], strides = [1, 1]} : vector<16x64xf32> to vector<16x8xf32>
    %26 = vector.extract_strided_slice %18 {offsets = [0, 0], sizes = [16, 8], strides = [1, 1]} : vector<16x64xf32> to vector<16x8xf32>
    %27 = vector.extract_strided_slice %18 {offsets = [0, 24], sizes = [16, 8], strides = [1, 1]} : vector<16x64xf32> to vector<16x8xf32>
    %28 = vector.extract_strided_slice %18 {offsets = [0, 16], sizes = [16, 8], strides = [1, 1]} : vector<16x64xf32> to vector<16x8xf32>
    %29 = vector.extract_strided_slice %18 {offsets = [0, 40], sizes = [16, 8], strides = [1, 1]} : vector<16x64xf32> to vector<16x8xf32>
    %30 = vector.extract_strided_slice %18 {offsets = [0, 32], sizes = [16, 8], strides = [1, 1]} : vector<16x64xf32> to vector<16x8xf32>
    %31 = vector.extract_strided_slice %18 {offsets = [0, 56], sizes = [16, 8], strides = [1, 1]} : vector<16x64xf32> to vector<16x8xf32>
    %32 = vector.extract_strided_slice %18 {offsets = [0, 48], sizes = [16, 8], strides = [1, 1]} : vector<16x64xf32> to vector<16x8xf32>
    %33 = tpu.concatenate %25, %26, %27, %28, %29, %30, %31, %32 in 1 : vector<16x8xf32>, vector<16x8xf32>, vector<16x8xf32>, vector<16x8xf32>, vector<16x8xf32>, vector<16x8xf32>, vector<16x8xf32>, vector<16x8xf32> -> vector<16x64xf32>
    %34 = arith.mulf %18, %23 : vector<16x64xf32>
    %35 = arith.mulf %33, %24 : vector<16x64xf32>
    %36 = arith.addf %34, %35 : vector<16x64xf32>
    %37 = arith.truncf %36 : vector<16x64xf32> to vector<16x64xbf16>
    %c0_12 = arith.constant 0 : index
    %c0_13 = arith.constant 0 : index
    %38 = vector.load %arg6[%c0_12, %c0_13] : memref<16x64xbf16, #tpu.memory_space<vmem>>, vector<16x64xbf16>
    tpu.vector_store %arg6[%c0_12, %c0_13], %37 {strides = array<i32>} : memref<16x64xbf16, #tpu.memory_space<vmem>>, vector<16x64xbf16>,
    %39 = tpu.concatenate %21, %21 in 1 : vector<16x16xf32>, vector<16x16xf32> -> vector<16x32xf32>
    %40 = tpu.concatenate %22, %22 in 1 : vector<16x16xf32>, vector<16x16xf32> -> vector<16x32xf32>
    %41 = vector.extract_strided_slice %19 {offsets = [0, 8], sizes = [16, 8], strides = [1, 1]} : vector<16x32xf32> to vector<16x8xf32>
    %42 = vector.extract_strided_slice %19 {offsets = [0, 0], sizes = [16, 8], strides = [1, 1]} : vector<16x32xf32> to vector<16x8xf32>
    %43 = vector.extract_strided_slice %19 {offsets = [0, 24], sizes = [16, 8], strides = [1, 1]} : vector<16x32xf32> to vector<16x8xf32>
    %44 = vector.extract_strided_slice %19 {offsets = [0, 16], sizes = [16, 8], strides = [1, 1]} : vector<16x32xf32> to vector<16x8xf32>
    %45 = tpu.concatenate %41, %42, %43, %44 in 1 : vector<16x8xf32>, vector<16x8xf32>, vector<16x8xf32>, vector<16x8xf32> -> vector<16x32xf32>
    %46 = arith.mulf %19, %39 : vector<16x32xf32>
    %47 = arith.mulf %45, %40 : vector<16x32xf32>
    %48 = arith.addf %46, %47 : vector<16x32xf32>
    %49 = arith.truncf %48 : vector<16x32xf32> to vector<16x32xbf16>
    %c0_14 = arith.constant 0 : index
    %c0_15 = arith.constant 0 : index
    %50 = vector.load %arg7[%c0_14, %c0_15] : memref<16x32xbf16, #tpu.memory_space<vmem>>, vector<16x32xbf16>
    tpu.vector_store %arg7[%c0_14, %c0_15], %49 {strides = array<i32>} : memref<16x32xbf16, #tpu.memory_space<vmem>>, vector<16x32xbf16>,
    %51 = arith.truncf %20 : vector<16x32xf32> to vector<16x32xbf16>
    %c0_16 = arith.constant 0 : index
    %c0_17 = arith.constant 0 : index
    %52 = vector.load %arg8[%c0_16, %c0_17] : memref<16x32xbf16, #tpu.memory_space<vmem>>, vector<16x32xbf16>
    tpu.vector_store %arg8[%c0_16, %c0_17], %51 {strides = array<i32>} : memref<16x32xbf16, #tpu.memory_space<vmem>>, vector<16x32xbf16>,
    return
  }
  func.func @transform_0(%arg0: i32) -> (i32, i32) {
    %c0_i32 = arith.constant 0 : i32
    %c0_i32_0 = arith.constant 0 : i32
    return %arg0, %c0_i32 : i32, i32
  }
  func.func @transform_1(%arg0: i32) -> (i32, i32) {
    %c0_i32 = arith.constant 0 : i32
    %c0_i32_0 = arith.constant 0 : i32
    %c0_i32_1 = arith.constant 0 : i32
    return %c0_i32, %c0_i32_0 : i32, i32
  }
  func.func @transform_2(%arg0: i32) -> (i32, i32) {
    %c0_i32 = arith.constant 0 : i32
    %c0_i32_0 = arith.constant 0 : i32
    %c0_i32_1 = arith.constant 0 : i32
    return %c0_i32, %c0_i32_0 : i32, i32
  }
  func.func @transform_3(%arg0: i32) -> (i32, i32) {
    %c0_i32 = arith.constant 0 : i32
    %c0_i32_0 = arith.constant 0 : i32
    return %arg0, %c0_i32 : i32, i32
  }
  func.func @transform_4(%arg0: i32) -> (i32, i32) {
    %c0_i32 = arith.constant 0 : i32
    %c0_i32_0 = arith.constant 0 : i32
    return %arg0, %c0_i32 : i32, i32
  }
  func.func @transform_5(%arg0: i32) -> (i32, i32) {
    %c0_i32 = arith.constant 0 : i32
    %c0_i32_0 = arith.constant 0 : i32
    return %arg0, %c0_i32 : i32, i32
  }
  func.func @transform_6(%arg0: i32) -> (i32, i32) {
    %c0_i32 = arith.constant 0 : i32
    %c0_i32_0 = arith.constant 0 : i32
    return %arg0, %c0_i32 : i32, i32
  }
  func.func @transform_7(%arg0: i32) -> (i32, i32) {
    %c0_i32 = arith.constant 0 : i32
    %c0_i32_0 = arith.constant 0 : i32
    return %arg0, %c0_i32 : i32, i32
  }
}

module attributes {stable_mosaic.version = 11 : i64} {
  func.func @_wo_res_norm_kernel(%arg0: i32, %arg1: i32, %arg2: memref<16x64xbf16, #tpu.memory_space<vmem>>, %arg3: memref<64x64xbf16, #tpu.memory_space<vmem>>, %arg4: memref<16x64xbf16, #tpu.memory_space<vmem>>, %arg5: memref<1x64xf32, #tpu.memory_space<vmem>>, %arg6: memref<16x64xbf16, #tpu.memory_space<vmem>>, %arg7: memref<16x64xbf16, #tpu.memory_space<vmem>>, %arg8: memref<16x64xf32, #tpu.memory_space<vmem>>) attributes {dimension_semantics = [#tpu.dimension_semantics<parallel>, #tpu.dimension_semantics<arbitrary>], iteration_bounds = array<i64: 1, 1>, scalar_prefetch = 0 : i64, scratch_operands = 1 : i64, tpu.core_type = #tpu.core_type<tc>, window_params = [{transform_indices = @transform_0, window_bounds = array<i64: 16, 64>}, {transform_indices = @transform_1, window_bounds = array<i64: 64, 64>}, {transform_indices = @transform_2, window_bounds = array<i64: 16, 64>}, {pipeline_mode = #tpu.pipeline_mode<synchronous>, transform_indices = @transform_3, window_bounds = array<i64: 1, 64>}, {transform_indices = @transform_4, window_bounds = array<i64: 16, 64>}, {transform_indices = @transform_5, window_bounds = array<i64: 16, 64>}]} {
    %c0_i32 = arith.constant 0 : i32
    %0 = arith.cmpi eq, %arg1, %c0_i32 : i32
    %1 = arith.extui %0 : i1 to i32
    %c0_i32_0 = arith.constant 0 : i32
    %2 = arith.cmpi ne, %1, %c0_i32_0 : i32
    scf.if %2 {
      %cst_10 = arith.constant 0.000000e+00 : f32
      %12 = vector.broadcast %cst_10 : f32 to vector<16x64xf32>
      %c0_11 = arith.constant 0 : index
      %c0_12 = arith.constant 0 : index
      %13 = vector.load %arg8[%c0_11, %c0_12] : memref<16x64xf32, #tpu.memory_space<vmem>>, vector<16x64xf32>
      tpu.vector_store %arg8[%c0_11, %c0_12], %12 {strides = array<i32>} : memref<16x64xf32, #tpu.memory_space<vmem>>, vector<16x64xf32>,
    } else {
    }
    %c0 = arith.constant 0 : index
    %c0_1 = arith.constant 0 : index
    %3 = vector.load %arg8[%c0, %c0_1] : memref<16x64xf32, #tpu.memory_space<vmem>>, vector<16x64xf32>
    %c0_2 = arith.constant 0 : index
    %c0_3 = arith.constant 0 : index
    %4 = vector.load %arg2[%c0_2, %c0_3] : memref<16x64xbf16, #tpu.memory_space<vmem>>, vector<16x64xbf16>
    %c0_4 = arith.constant 0 : index
    %c0_5 = arith.constant 0 : index
    %5 = vector.load %arg3[%c0_4, %c0_5] : memref<64x64xbf16, #tpu.memory_space<vmem>>, vector<64x64xbf16>
    %cst = arith.constant dense<0.000000e+00> : vector<16x64xf32>
    %6 = tpu.matmul %4, %5, %cst {dimension_numbers = #tpu.dot_dimension_numbers<[1], [0], [0], [1], [0, 0, 1, 1], [], []>} : vector<16x64xbf16>, vector<64x64xbf16>, vector<16x64xf32> -> vector<16x64xf32>
    %7 = arith.addf %3, %6 : vector<16x64xf32>
    %c0_6 = arith.constant 0 : index
    %c0_7 = arith.constant 0 : index
    %8 = vector.load %arg8[%c0_6, %c0_7] : memref<16x64xf32, #tpu.memory_space<vmem>>, vector<16x64xf32>
    tpu.vector_store %arg8[%c0_6, %c0_7], %7 {strides = array<i32>} : memref<16x64xf32, #tpu.memory_space<vmem>>, vector<16x64xf32>,
    %c0_i32_8 = arith.constant 0 : i32
    %9 = arith.cmpi eq, %arg1, %c0_i32_8 : i32
    %10 = arith.extui %9 : i1 to i32
    %c0_i32_9 = arith.constant 0 : i32
    %11 = arith.cmpi ne, %10, %c0_i32_9 : i32
    scf.if %11 {
      %c0_10 = arith.constant 0 : index
      %c0_11 = arith.constant 0 : index
      %12 = vector.load %arg4[%c0_10, %c0_11] : memref<16x64xbf16, #tpu.memory_space<vmem>>, vector<16x64xbf16>
      %13 = arith.extf %12 : vector<16x64xbf16> to vector<16x64xf32>
      %c0_12 = arith.constant 0 : index
      %c0_13 = arith.constant 0 : index
      %14 = vector.load %arg8[%c0_12, %c0_13] : memref<16x64xf32, #tpu.memory_space<vmem>>, vector<16x64xf32>
      %15 = arith.addf %13, %14 : vector<16x64xf32>
      %16 = arith.truncf %15 : vector<16x64xf32> to vector<16x64xbf16>
      %c0_14 = arith.constant 0 : index
      %c0_15 = arith.constant 0 : index
      %17 = vector.load %arg6[%c0_14, %c0_15] : memref<16x64xbf16, #tpu.memory_space<vmem>>, vector<16x64xbf16>
      tpu.vector_store %arg6[%c0_14, %c0_15], %16 {strides = array<i32>} : memref<16x64xbf16, #tpu.memory_space<vmem>>, vector<16x64xbf16>,
      %18 = arith.mulf %15, %15 : vector<16x64xf32>
      %cst_16 = arith.constant dense<0.000000e+00> : vector<16xf32>
      %19 = vector.multi_reduction <add>, %18, %cst_16 [1] : vector<16x64xf32> to vector<16xf32>
      %20 = vector.shape_cast %19 : vector<16xf32> to vector<16x1xf32>
      %cst_17 = arith.constant 6.400000e+01 : f32
      %21 = vector.broadcast %cst_17 : f32 to vector<16x1xf32>
      %22 = arith.divf %20, %21 : vector<16x1xf32>
      %cst_18 = arith.constant 9.99999974E-6 : f32
      %23 = vector.broadcast %cst_18 : f32 to vector<16x1xf32>
      %24 = arith.addf %22, %23 : vector<16x1xf32>
      %25 = math.rsqrt %24 : vector<16x1xf32>
      %26 = vector.broadcast %25 : vector<16x1xf32> to vector<16x64xf32>
      %27 = arith.mulf %15, %26 : vector<16x64xf32>
      %c0_19 = arith.constant 0 : index
      %c0_20 = arith.constant 0 : index
      %28 = vector.load %arg5[%c0_19, %c0_20] : memref<1x64xf32, #tpu.memory_space<vmem>>, vector<1x64xf32>
      %29 = vector.broadcast %28 : vector<1x64xf32> to vector<16x64xf32>
      %30 = arith.mulf %27, %29 : vector<16x64xf32>
      %31 = arith.truncf %30 : vector<16x64xf32> to vector<16x64xbf16>
      %c0_21 = arith.constant 0 : index
      %c0_22 = arith.constant 0 : index
      %32 = vector.load %arg7[%c0_21, %c0_22] : memref<16x64xbf16, #tpu.memory_space<vmem>>, vector<16x64xbf16>
      tpu.vector_store %arg7[%c0_21, %c0_22], %31 {strides = array<i32>} : memref<16x64xbf16, #tpu.memory_space<vmem>>, vector<16x64xbf16>,
    } else {
    }
    return
  }
  func.func @transform_0(%arg0: i32, %arg1: i32) -> (i32, i32) {
    %c0_i32 = arith.constant 0 : i32
    return %arg0, %arg1 : i32, i32
  }
  func.func @transform_1(%arg0: i32, %arg1: i32) -> (i32, i32) {
    %c0_i32 = arith.constant 0 : i32
    %c0_i32_0 = arith.constant 0 : i32
    return %arg1, %c0_i32 : i32, i32
  }
  func.func @transform_2(%arg0: i32, %arg1: i32) -> (i32, i32) {
    %c0_i32 = arith.constant 0 : i32
    %c0_i32_0 = arith.constant 0 : i32
    return %arg0, %c0_i32 : i32, i32
  }
  func.func @transform_3(%arg0: i32, %arg1: i32) -> (i32, i32) {
    %c0_i32 = arith.constant 0 : i32
    %c0_i32_0 = arith.constant 0 : i32
    %c0_i32_1 = arith.constant 0 : i32
    return %c0_i32, %c0_i32_0 : i32, i32
  }
  func.func @transform_4(%arg0: i32, %arg1: i32) -> (i32, i32) {
    %c0_i32 = arith.constant 0 : i32
    %c0_i32_0 = arith.constant 0 : i32
    return %arg0, %c0_i32 : i32, i32
  }
  func.func @transform_5(%arg0: i32, %arg1: i32) -> (i32, i32) {
    %c0_i32 = arith.constant 0 : i32
    %c0_i32_0 = arith.constant 0 : i32
    return %arg0, %c0_i32 : i32, i32
  }
}

module attributes {stable_mosaic.version = 11 : i64} {
  func.func @_ffn_kernel(%arg0: i32, %arg1: i32, %arg2: memref<16x64xbf16, #tpu.memory_space<vmem>>, %arg3: memref<64x192xbf16, #tpu.memory_space<vmem>>, %arg4: memref<64x192xbf16, #tpu.memory_space<vmem>>, %arg5: memref<192x64xbf16, #tpu.memory_space<vmem>>, %arg6: memref<16x64xbf16, #tpu.memory_space<vmem>>, %arg7: memref<16x64xbf16, #tpu.memory_space<vmem>>, %arg8: memref<16x64xf32, #tpu.memory_space<vmem>>) attributes {dimension_semantics = [#tpu.dimension_semantics<parallel>, #tpu.dimension_semantics<arbitrary>], iteration_bounds = array<i64: 1, 1>, scalar_prefetch = 0 : i64, scratch_operands = 1 : i64, tpu.core_type = #tpu.core_type<tc>, window_params = [{transform_indices = @transform_0, window_bounds = array<i64: 16, 64>}, {transform_indices = @transform_1, window_bounds = array<i64: 64, 192>}, {transform_indices = @transform_2, window_bounds = array<i64: 64, 192>}, {transform_indices = @transform_3, window_bounds = array<i64: 192, 64>}, {transform_indices = @transform_4, window_bounds = array<i64: 16, 64>}, {transform_indices = @transform_5, window_bounds = array<i64: 16, 64>}]} {
    %c0_i32 = arith.constant 0 : i32
    %0 = arith.cmpi eq, %arg1, %c0_i32 : i32
    %1 = arith.extui %0 : i1 to i32
    %c0_i32_0 = arith.constant 0 : i32
    %2 = arith.cmpi ne, %1, %c0_i32_0 : i32
    scf.if %2 {
      %c0_17 = arith.constant 0 : index
      %c0_18 = arith.constant 0 : index
      %24 = vector.load %arg6[%c0_17, %c0_18] : memref<16x64xbf16, #tpu.memory_space<vmem>>, vector<16x64xbf16>
      %25 = arith.extf %24 : vector<16x64xbf16> to vector<16x64xf32>
      %c0_19 = arith.constant 0 : index
      %c0_20 = arith.constant 0 : index
      %26 = vector.load %arg8[%c0_19, %c0_20] : memref<16x64xf32, #tpu.memory_space<vmem>>, vector<16x64xf32>
      tpu.vector_store %arg8[%c0_19, %c0_20], %25 {strides = array<i32>} : memref<16x64xf32, #tpu.memory_space<vmem>>, vector<16x64xf32>,
    } else {
    }
    %c0 = arith.constant 0 : index
    %c0_1 = arith.constant 0 : index
    %3 = vector.load %arg2[%c0, %c0_1] : memref<16x64xbf16, #tpu.memory_space<vmem>>, vector<16x64xbf16>
    %c0_2 = arith.constant 0 : index
    %c0_3 = arith.constant 0 : index
    %4 = vector.load %arg3[%c0_2, %c0_3] : memref<64x192xbf16, #tpu.memory_space<vmem>>, vector<64x192xbf16>
    %cst = arith.constant dense<0.000000e+00> : vector<16x192xf32>
    %5 = tpu.matmul %3, %4, %cst {dimension_numbers = #tpu.dot_dimension_numbers<[1], [0], [0], [1], [0, 0, 1, 1], [], []>} : vector<16x64xbf16>, vector<64x192xbf16>, vector<16x192xf32> -> vector<16x192xf32>
    %c0_4 = arith.constant 0 : index
    %c0_5 = arith.constant 0 : index
    %6 = vector.load %arg4[%c0_4, %c0_5] : memref<64x192xbf16, #tpu.memory_space<vmem>>, vector<64x192xbf16>
    %cst_6 = arith.constant dense<0.000000e+00> : vector<16x192xf32>
    %7 = tpu.matmul %3, %6, %cst_6 {dimension_numbers = #tpu.dot_dimension_numbers<[1], [0], [0], [1], [0, 0, 1, 1], [], []>} : vector<16x64xbf16>, vector<64x192xbf16>, vector<16x192xf32> -> vector<16x192xf32>
    %8 = arith.negf %5 : vector<16x192xf32>
    %9 = math.exp %8 : vector<16x192xf32>
    %cst_7 = arith.constant 1.000000e+00 : f32
    %10 = vector.broadcast %cst_7 : f32 to vector<16x192xf32>
    %11 = arith.addf %10, %9 : vector<16x192xf32>
    %12 = arith.divf %10, %11 : vector<16x192xf32>
    %13 = arith.mulf %5, %12 : vector<16x192xf32>
    %14 = arith.mulf %13, %7 : vector<16x192xf32>
    %15 = arith.truncf %14 : vector<16x192xf32> to vector<16x192xbf16>
    %c0_8 = arith.constant 0 : index
    %c0_9 = arith.constant 0 : index
    %16 = vector.load %arg8[%c0_8, %c0_9] : memref<16x64xf32, #tpu.memory_space<vmem>>, vector<16x64xf32>
    %c0_10 = arith.constant 0 : index
    %c0_11 = arith.constant 0 : index
    %17 = vector.load %arg5[%c0_10, %c0_11] : memref<192x64xbf16, #tpu.memory_space<vmem>>, vector<192x64xbf16>
    %cst_12 = arith.constant dense<0.000000e+00> : vector<16x64xf32>
    %18 = tpu.matmul %15, %17, %cst_12 {dimension_numbers = #tpu.dot_dimension_numbers<[1], [0], [0], [1], [0, 0, 1, 1], [], []>} : vector<16x192xbf16>, vector<192x64xbf16>, vector<16x64xf32> -> vector<16x64xf32>
    %19 = arith.addf %16, %18 : vector<16x64xf32>
    %c0_13 = arith.constant 0 : index
    %c0_14 = arith.constant 0 : index
    %20 = vector.load %arg8[%c0_13, %c0_14] : memref<16x64xf32, #tpu.memory_space<vmem>>, vector<16x64xf32>
    tpu.vector_store %arg8[%c0_13, %c0_14], %19 {strides = array<i32>} : memref<16x64xf32, #tpu.memory_space<vmem>>, vector<16x64xf32>,
    %c0_i32_15 = arith.constant 0 : i32
    %21 = arith.cmpi eq, %arg1, %c0_i32_15 : i32
    %22 = arith.extui %21 : i1 to i32
    %c0_i32_16 = arith.constant 0 : i32
    %23 = arith.cmpi ne, %22, %c0_i32_16 : i32
    scf.if %23 {
      %c0_17 = arith.constant 0 : index
      %c0_18 = arith.constant 0 : index
      %24 = vector.load %arg8[%c0_17, %c0_18] : memref<16x64xf32, #tpu.memory_space<vmem>>, vector<16x64xf32>
      %25 = arith.truncf %24 : vector<16x64xf32> to vector<16x64xbf16>
      %c0_19 = arith.constant 0 : index
      %c0_20 = arith.constant 0 : index
      %26 = vector.load %arg7[%c0_19, %c0_20] : memref<16x64xbf16, #tpu.memory_space<vmem>>, vector<16x64xbf16>
      tpu.vector_store %arg7[%c0_19, %c0_20], %25 {strides = array<i32>} : memref<16x64xbf16, #tpu.memory_space<vmem>>, vector<16x64xbf16>,
    } else {
    }
    return
  }
  func.func @transform_0(%arg0: i32, %arg1: i32) -> (i32, i32) {
    %c0_i32 = arith.constant 0 : i32
    %c0_i32_0 = arith.constant 0 : i32
    return %arg0, %c0_i32 : i32, i32
  }
  func.func @transform_1(%arg0: i32, %arg1: i32) -> (i32, i32) {
    %c0_i32 = arith.constant 0 : i32
    %c0_i32_0 = arith.constant 0 : i32
    return %c0_i32, %arg1 : i32, i32
  }
  func.func @transform_2(%arg0: i32, %arg1: i32) -> (i32, i32) {
    %c0_i32 = arith.constant 0 : i32
    %c0_i32_0 = arith.constant 0 : i32
    return %c0_i32, %arg1 : i32, i32
  }
  func.func @transform_3(%arg0: i32, %arg1: i32) -> (i32, i32) {
    %c0_i32 = arith.constant 0 : i32
    %c0_i32_0 = arith.constant 0 : i32
    return %arg1, %c0_i32 : i32, i32
  }
  func.func @transform_4(%arg0: i32, %arg1: i32) -> (i32, i32) {
    %c0_i32 = arith.constant 0 : i32
    %c0_i32_0 = arith.constant 0 : i32
    return %arg0, %c0_i32 : i32, i32
  }
  func.func @transform_5(%arg0: i32, %arg1: i32) -> (i32, i32) {
    %c0_i32 = arith.constant 0 : i32
    %c0_i32_0 = arith.constant 0 : i32
    return %arg0, %c0_i32 : i32, i32
  }
}

module attributes {stable_mosaic.version = 11 : i64} {
  func.func @_rmsnorm_kernel(%arg0: i32, %arg1: memref<16x64xbf16, #tpu.memory_space<vmem>>, %arg2: memref<1x64xf32, #tpu.memory_space<vmem>>, %arg3: memref<16x64xbf16, #tpu.memory_space<vmem>>) attributes {dimension_semantics = [#tpu.dimension_semantics<parallel>], iteration_bounds = array<i64: 1>, scalar_prefetch = 0 : i64, scratch_operands = 0 : i64, tpu.core_type = #tpu.core_type<tc>, window_params = [{transform_indices = @transform_0, window_bounds = array<i64: 16, 64>}, {pipeline_mode = #tpu.pipeline_mode<synchronous>, transform_indices = @transform_1, window_bounds = array<i64: 1, 64>}, {transform_indices = @transform_2, window_bounds = array<i64: 16, 64>}]} {
    %c0 = arith.constant 0 : index
    %c0_0 = arith.constant 0 : index
    %0 = vector.load %arg1[%c0, %c0_0] : memref<16x64xbf16, #tpu.memory_space<vmem>>, vector<16x64xbf16>
    %1 = arith.extf %0 : vector<16x64xbf16> to vector<16x64xf32>
    %2 = arith.mulf %1, %1 : vector<16x64xf32>
    %cst = arith.constant dense<0.000000e+00> : vector<16xf32>
    %3 = vector.multi_reduction <add>, %2, %cst [1] : vector<16x64xf32> to vector<16xf32>
    %4 = vector.shape_cast %3 : vector<16xf32> to vector<16x1xf32>
    %cst_1 = arith.constant 6.400000e+01 : f32
    %5 = vector.broadcast %cst_1 : f32 to vector<16x1xf32>
    %6 = arith.divf %4, %5 : vector<16x1xf32>
    %cst_2 = arith.constant 9.99999974E-6 : f32
    %7 = vector.broadcast %cst_2 : f32 to vector<16x1xf32>
    %8 = arith.addf %6, %7 : vector<16x1xf32>
    %9 = math.rsqrt %8 : vector<16x1xf32>
    %10 = vector.broadcast %9 : vector<16x1xf32> to vector<16x64xf32>
    %11 = arith.mulf %1, %10 : vector<16x64xf32>
    %c0_3 = arith.constant 0 : index
    %c0_4 = arith.constant 0 : index
    %12 = vector.load %arg2[%c0_3, %c0_4] : memref<1x64xf32, #tpu.memory_space<vmem>>, vector<1x64xf32>
    %13 = vector.broadcast %12 : vector<1x64xf32> to vector<16x64xf32>
    %14 = arith.mulf %11, %13 : vector<16x64xf32>
    %15 = arith.truncf %14 : vector<16x64xf32> to vector<16x64xbf16>
    %c0_5 = arith.constant 0 : index
    %c0_6 = arith.constant 0 : index
    %16 = vector.load %arg3[%c0_5, %c0_6] : memref<16x64xbf16, #tpu.memory_space<vmem>>, vector<16x64xbf16>
    tpu.vector_store %arg3[%c0_5, %c0_6], %15 {strides = array<i32>} : memref<16x64xbf16, #tpu.memory_space<vmem>>, vector<16x64xbf16>,
    return
  }
  func.func @transform_0(%arg0: i32) -> (i32, i32) {
    %c0_i32 = arith.constant 0 : i32
    %c0_i32_0 = arith.constant 0 : i32
    return %arg0, %c0_i32 : i32, i32
  }
  func.func @transform_1(%arg0: i32) -> (i32, i32) {
    %c0_i32 = arith.constant 0 : i32
    %c0_i32_0 = arith.constant 0 : i32
    %c0_i32_1 = arith.constant 0 : i32
    return %c0_i32, %c0_i32_0 : i32, i32
  }
  func.func @transform_2(%arg0: i32) -> (i32, i32) {
    %c0_i32 = arith.constant 0 : i32
    %c0_i32_0 = arith.constant 0 : i32
    return %arg0, %c0_i32 : i32, i32
  }
}

module attributes {stable_mosaic.version = 11 : i64} {
  func.func @_matmul_kernel(%arg0: i32, %arg1: i32, %arg2: i32, %arg3: memref<16x64xbf16, #tpu.memory_space<vmem>>, %arg4: memref<64x128xbf16, #tpu.memory_space<vmem>>, %arg5: memref<16x128xf32, #tpu.memory_space<vmem>>, %arg6: memref<16x128xf32, #tpu.memory_space<vmem>>) attributes {dimension_semantics = [#tpu.dimension_semantics<parallel>, #tpu.dimension_semantics<parallel>, #tpu.dimension_semantics<arbitrary>], iteration_bounds = array<i64: 1, 1, 1>, scalar_prefetch = 0 : i64, scratch_operands = 1 : i64, tpu.core_type = #tpu.core_type<tc>, window_params = [{transform_indices = @transform_0, window_bounds = array<i64: 16, 64>}, {transform_indices = @transform_1, window_bounds = array<i64: 64, 128>}, {transform_indices = @transform_2, window_bounds = array<i64: 16, 128>}]} {
    %c0_i32 = arith.constant 0 : i32
    %0 = arith.cmpi eq, %arg2, %c0_i32 : i32
    %1 = arith.extui %0 : i1 to i32
    %c0_i32_0 = arith.constant 0 : i32
    %2 = arith.cmpi ne, %1, %c0_i32_0 : i32
    scf.if %2 {
      %cst_10 = arith.constant 0.000000e+00 : f32
      %12 = vector.broadcast %cst_10 : f32 to vector<16x128xf32>
      %c0_11 = arith.constant 0 : index
      %c0_12 = arith.constant 0 : index
      %13 = vector.load %arg6[%c0_11, %c0_12] : memref<16x128xf32, #tpu.memory_space<vmem>>, vector<16x128xf32>
      tpu.vector_store %arg6[%c0_11, %c0_12], %12 {strides = array<i32>} : memref<16x128xf32, #tpu.memory_space<vmem>>, vector<16x128xf32>,
    } else {
    }
    %c0 = arith.constant 0 : index
    %c0_1 = arith.constant 0 : index
    %3 = vector.load %arg6[%c0, %c0_1] : memref<16x128xf32, #tpu.memory_space<vmem>>, vector<16x128xf32>
    %c0_2 = arith.constant 0 : index
    %c0_3 = arith.constant 0 : index
    %4 = vector.load %arg3[%c0_2, %c0_3] : memref<16x64xbf16, #tpu.memory_space<vmem>>, vector<16x64xbf16>
    %c0_4 = arith.constant 0 : index
    %c0_5 = arith.constant 0 : index
    %5 = vector.load %arg4[%c0_4, %c0_5] : memref<64x128xbf16, #tpu.memory_space<vmem>>, vector<64x128xbf16>
    %cst = arith.constant dense<0.000000e+00> : vector<16x128xf32>
    %6 = tpu.matmul %4, %5, %cst {dimension_numbers = #tpu.dot_dimension_numbers<[1], [0], [0], [1], [0, 0, 1, 1], [], []>} : vector<16x64xbf16>, vector<64x128xbf16>, vector<16x128xf32> -> vector<16x128xf32>
    %7 = arith.addf %3, %6 : vector<16x128xf32>
    %c0_6 = arith.constant 0 : index
    %c0_7 = arith.constant 0 : index
    %8 = vector.load %arg6[%c0_6, %c0_7] : memref<16x128xf32, #tpu.memory_space<vmem>>, vector<16x128xf32>
    tpu.vector_store %arg6[%c0_6, %c0_7], %7 {strides = array<i32>} : memref<16x128xf32, #tpu.memory_space<vmem>>, vector<16x128xf32>,
    %c0_i32_8 = arith.constant 0 : i32
    %9 = arith.cmpi eq, %arg2, %c0_i32_8 : i32
    %10 = arith.extui %9 : i1 to i32
    %c0_i32_9 = arith.constant 0 : i32
    %11 = arith.cmpi ne, %10, %c0_i32_9 : i32
    scf.if %11 {
      %c0_10 = arith.constant 0 : index
      %c0_11 = arith.constant 0 : index
      %12 = vector.load %arg6[%c0_10, %c0_11] : memref<16x128xf32, #tpu.memory_space<vmem>>, vector<16x128xf32>
      %c0_12 = arith.constant 0 : index
      %c0_13 = arith.constant 0 : index
      %13 = vector.load %arg5[%c0_12, %c0_13] : memref<16x128xf32, #tpu.memory_space<vmem>>, vector<16x128xf32>
      tpu.vector_store %arg5[%c0_12, %c0_13], %12 {strides = array<i32>} : memref<16x128xf32, #tpu.memory_space<vmem>>, vector<16x128xf32>,
    } else {
    }
    return
  }
  func.func @transform_0(%arg0: i32, %arg1: i32, %arg2: i32) -> (i32, i32) {
    %c0_i32 = arith.constant 0 : i32
    return %arg0, %arg2 : i32, i32
  }
  func.func @transform_1(%arg0: i32, %arg1: i32, %arg2: i32) -> (i32, i32) {
    %c0_i32 = arith.constant 0 : i32
    return %arg2, %arg1 : i32, i32
  }
  func.func @transform_2(%arg0: i32, %arg1: i32, %arg2: i32) -> (i32, i32) {
    %c0_i32 = arith.constant 0 : i32
    return %arg0, %arg1 : i32, i32
  }
}

</mosaic_0001>

<llo_original>
// kernel: tpu_custom_call.1
$region0: #{tpu_custom_call.1}
  #allocation0 [shape = 'u32[]', space=smem, size = 0x4, offset = 0x4, fixed_abs, tag = 'smem constant byte address 0x4 - core index']
  #allocation1 [shape = 'u32[72,128]{1,0:T(1,128)}', space=vmem, size = 0x9000, scoped, tag = 'internal scratch']
  %s0 = inlined_call_operand.hbm [shape: f32[8,128], index: 0, kind: input, shape index: {}]
  %s1 = inlined_call_operand.hbm [shape: f32[16,128], index: 1, kind: output, shape index: {}]
  %s2 = sld [smem:[#allocation0]]
  $region41: #{tpu_custom_call.1} parent=0
    _
  %s4 = ssub.s32 1, %s2
  %s5 = scalar_select 0, %s4, %s2
  $region1: #{tpu_custom_call.1} parent=0
    #allocation2 [shape = 'u8[4096]{0}', space=vmem, size = 0x1000, scoped, tag = 'input window, operand 0, single buffered']
    #allocation3 [shape = 's32[2]{0}', space=sflag, size = 0x8, scoped, tag = 'scoped memory for tpu_custom_call.1']
    #allocation4 [shape = 's32[2]{0}', space=sflag, size = 0x8, scoped, tag = 'scoped memory for tpu_custom_call.1']
    #allocation5 [shape = 'u8[8192]{0}', space=vmem, size = 0x2000, scoped, tag = 'output window, operand 0']
    %6 = vsyncpa [#allocation3], 0
    %7 = vsyncpa [#allocation4], 0
    %s8 = scalar_lea.sflag [#allocation4], 1
    %9 = vsyncpa %s8, 0
    loop: start=0, step=1, limit=4
    $region2: #{tpu_custom_call.1} parent=1 // loop_pre_header
      _
    $region3: #{tpu_custom_call.1} parent=1 // loop_header
      %s11 = sphi 0, %s15
      %p12 = scmp.ge.s32.totalorder %s11, 4
      %s19 = sphi 0, %s19
      %s21 = sphi 0, %s19
      %s22 = sphi 0, %s21
      %s36 = sphi 0, %s22
      %s42 = sphi 0, %s44
      %s45 = sphi 0, %s42
      %s46 = sphi 0, %s45
      %s62 = sphi 0, %s46
    $region4: #{tpu_custom_call.1} parent=1 // loop_header_branch
      %14 = sbr.rel (%p12) target = $region8
    $region5: #{tpu_custom_call.1} parent=1 // loop_body
      %s16 = ssub.s32 %s11, 1
      %s17 = ssub.s32 %s11, 2
      %s18 = sadd.s32 %s11, 1
      %s20 = sadd.s32 %s19, 1
      %p23 = scmp.eq.s32.totalorder %s11, 1
      %p24 = scmp.ne.s32.totalorder %s19, %s21
      %p25 = scmp.eq.s32.totalorder %s11, 0
      %p26 = por %p24, %p25
      %p27 = scmp.ne.s32.totalorder %s19, %s21
      %p28 = scmp.eq.s32.totalorder %s16, 1
      %p29 = por %p27, %p28
      %p30 = scmp.ne.s32.totalorder %s21, %s22
      %p31 = scmp.eq.s32.totalorder %s16, 0
      %p32 = por %p30, %p31
      %p33 = scmp.ne.s32.totalorder %s21, %s22
      %p34 = scmp.eq.s32.totalorder %s17, 1
      %p35 = por %p33, %p34
      %p37 = scmp.ne.s32.totalorder %s22, %s36
      %p38 = scmp.eq.s32.totalorder %s17, 0
      %p39 = por %p37, %p38
      %s40 = ssub.s32 %s11, %s18
      %p41 = scmp.eq.s32.totalorder %s40, 0
      %s43 = sadd.s32 %s42, 1
      %s44 = scalar_select %p41, %s42, %s43
      %p47 = pneg %p41
      %p48 = scmp.eq.s32.totalorder %s11, 1
      %p49 = por %p47, %p48
      %p50 = scmp.ne.s32.totalorder %s42, %s45
      %p51 = scmp.eq.s32.totalorder %s11, 0
      %p52 = por %p50, %p51
      %p53 = scmp.ne.s32.totalorder %s42, %s45
      %p54 = scmp.eq.s32.totalorder %s16, 1
      %p55 = por %p53, %p54
      %p56 = scmp.ne.s32.totalorder %s45, %s46
      %p57 = scmp.eq.s32.totalorder %s16, 0
      %p58 = por %p56, %p57
      %p59 = scmp.ne.s32.totalorder %s45, %s46
      %p60 = scmp.eq.s32.totalorder %s17, 1
      %p61 = por %p59, %p60
      %p63 = scmp.ne.s32.totalorder %s46, %s62
      %p64 = scmp.eq.s32.totalorder %s17, 0
      %p65 = por %p63, %p64
      %p66 = scmp.le.s32.totalorder 1, %s11
      %p67 = scmp.lt.s32.totalorder %s11, 3
      %p68 = pnand %p66, %p67
      %p69 = pneg %p68
      // Predicated region
      $region9: #{tpu_custom_call.1} parent=5 // pred_check
        _
      $region10: #{tpu_custom_call.1} parent=5 // pred_check_branch
        %71 = sbr.rel (%p68) target = $region12
      $region11: #{tpu_custom_call.1} parent=5 // pred_region
        %s72 = ssub.s32 %s11, 1
        // Predicated region
        $region13: #{tpu_custom_call.1} parent=11 // pred_check
          %p73 = pneg %p32
        $region14: #{tpu_custom_call.1} parent=11 // pred_check_branch
          %75 = sbr.rel (%p73) target = $region16
        $region15: #{tpu_custom_call.1} parent=11 // pred_region
          %77 = vsyncadd [#allocation3], 0
          %s79 = sshll.u32 %s0, 4
          %s80 = int_to_ptr.hbm [resolvable:$true] %s79
          %s81 = sshll.u32 [#allocation2], 4
          %s82 = int_to_ptr.vmem [resolvable:$true] %s81
          %84 = dma.hbm_to_vmem [thread:$0]  %s80, 128, %s82, [#allocation3]
        $region16: #{tpu_custom_call.1} parent=11 // pred_fallthru
          _
      $region12: #{tpu_custom_call.1} parent=5 // pred_fallthru
        _
      %p85 = scmp.lt.s32.totalorder %s11, 2
      // Predicated region
      $region17: #{tpu_custom_call.1} parent=5 // pred_check
        %p86 = pneg %p85
      $region18: #{tpu_custom_call.1} parent=5 // pred_check_branch
        %88 = sbr.rel (%p86) target = $region20
      $region19: #{tpu_custom_call.1} parent=5 // pred_region
        _
      $region20: #{tpu_custom_call.1} parent=5 // pred_fallthru
        _
      %p89 = scmp.le.s32.totalorder 1, %s11
      %p90 = scmp.lt.s32.totalorder %s11, 3
      %p91 = pnand %p89, %p90
      %p92 = pneg %p91
      // Predicated region
      $region21: #{tpu_custom_call.1} parent=5 // pred_check
        _
      $region22: #{tpu_custom_call.1} parent=5 // pred_check_branch
        %94 = sbr.rel (%p91) target = $region24
      $region23: #{tpu_custom_call.1} parent=5 // pred_region
        %s95 = ssub.s32 %s11, 1
        // Predicated region
        $region25: #{tpu_custom_call.1} parent=23 // pred_check
          %p96 = pneg %p32
        $region26: #{tpu_custom_call.1} parent=23 // pred_check_branch
          %98 = sbr.rel (%p96) target = $region28
        $region27: #{tpu_custom_call.1} parent=23 // pred_region
          %100 = dma.done [#allocation3], 128
        $region28: #{tpu_custom_call.1} parent=23 // pred_fallthru
          _
        %p101 = pneg %p32
        %p102 = pneg %p29
        %p103 = pneg %p58
        %p104 = pneg %p55
        %s105 = sand.u32 %s45, 1
        %s106 = scalar_lea.sflag [#allocation4], %s105
        %s107 = sand.u32 %s45, 1
        %s108 = smul.addr %s107, 8
        %s109 = scalar_lea.vmem [#allocation5], %s108
        %v110 = vld [vmem:[#allocation2] sm:$0xff]
        %111 = vst [vmem:[%s109] sm:$0xff] %v110
        %s112 = sand.u32 %s45, 1
        %s113 = scalar_lea.sflag [#allocation4], %s112
        %s114 = sand.u32 %s45, 1
        %s115 = smul.addr %s114, 8
        %s116 = scalar_lea.vmem [#allocation5], %s115
        // Predicated region
        $region29: #{tpu_custom_call.1} parent=23 // pred_check
          %p117 = pneg %p55
        $region30: #{tpu_custom_call.1} parent=23 // pred_check_branch
          %119 = sbr.rel (%p117) target = $region32
        $region31: #{tpu_custom_call.1} parent=23 // pred_region
          %121 = vsyncadd %s113, 0
          %s122 = smul.addr %s16, 8
          %s123 = scalar_lea.hbm %s1, %s122
          %s125 = sshll.u32 %s116, 4
          %s126 = int_to_ptr.vmem [resolvable:$true] %s125
          %s127 = sshll.u32 %s123, 4
          %s128 = int_to_ptr.hbm [resolvable:$true] %s127
          %130 = dma.vmem_to_hbm [thread:$0]  %s126, 128, %s128, %s113
        $region32: #{tpu_custom_call.1} parent=23 // pred_fallthru
          _
      $region24: #{tpu_custom_call.1} parent=5 // pred_fallthru
        _
      %p131 = scmp.le.s32.totalorder 2, %s11
      // Predicated region
      $region33: #{tpu_custom_call.1} parent=5 // pred_check
        %p132 = pneg %p131
      $region34: #{tpu_custom_call.1} parent=5 // pred_check_branch
        %134 = sbr.rel (%p132) target = $region36
      $region35: #{tpu_custom_call.1} parent=5 // pred_region
        %s135 = ssub.s32 %s11, 2
        // Predicated region
        $region37: #{tpu_custom_call.1} parent=35 // pred_check
          %p136 = pneg %p61
        $region38: #{tpu_custom_call.1} parent=35 // pred_check_branch
          %138 = sbr.rel (%p136) target = $region40
        $region39: #{tpu_custom_call.1} parent=35 // pred_region
          %s139 = sand.u32 %s46, 1
          %s140 = scalar_lea.sflag [#allocation4], %s139
          %s141 = sand.u32 %s46, 1
          %s142 = smul.addr %s141, 8
          %s143 = scalar_lea.vmem [#allocation5], %s142
          %145 = dma.done %s140, 128
        $region40: #{tpu_custom_call.1} parent=35 // pred_fallthru
          _
      $region36: #{tpu_custom_call.1} parent=5 // pred_fallthru
        _
    $region6: #{tpu_custom_call.1} parent=1 // loop_footer
      %s15 = sadd.s32 1, %s11
    $region7: #{tpu_custom_call.1} parent=1 // loop_footer_branch
      %10 = sbr.rel target = $region3
    $region8: #{tpu_custom_call.1} parent=1 // loop_exit
      _
    %146 = vsyncpa [#allocation3], 1
    %s147 = scalar_lea.sflag [#allocation3], 1
    %148 = vsyncpa %s147, 1
    %149 = vsyncpa [#allocation4], 1
    %s150 = scalar_lea.sflag [#allocation4], 1
    %151 = vsyncpa %s150, 1

// kernel: transformer_forward.11
$region0: #{transformer_forward.11}
  #allocation0 [shape = 'u32[]', space=smem, size = 0x4, offset = 0x4, fixed_abs, tag = 'smem constant byte address 0x4 - core index']
  #allocation1 [shape = 'u32[72,128]{1,0:T(1,128)}', space=vmem, size = 0x9000, scoped, tag = 'internal scratch']
  %s0 = inlined_call_operand.vmem [shape: bf16[2,8,64], index: 0, kind: input, shape index: {}]
  %s1 = inlined_call_operand.vmem [shape: bf16[2,8,32], index: 1, kind: input, shape index: {}]
  %s2 = inlined_call_operand.vmem [shape: bf16[2,8,32], index: 2, kind: input, shape index: {}]
  %s3 = inlined_call_operand.vmem [shape: bf16[2,8,64], index: 3, kind: output, shape index: {}]
  %s4 = sld [smem:[#allocation0]]
  $region45: #{transformer_forward.11} parent=0
    _
  %s6 = ssub.s32 1, %s4
  %s7 = scalar_select 0, %s6, %s4
  loop: start=0, step=1, limit=4
  $region2: #{transformer_forward.11} parent=0 // loop_pre_header
    _
  $region3: #{transformer_forward.11} parent=0 // loop_header
    %s9 = sphi 0, %s13
    %p10 = scmp.ge.s32.totalorder %s9, 4
    %s16 = sphi 0, %s28
    %s17 = sphi 0, %s24
    %s18 = sphi 0, %s16
    %s19 = sphi 0, %s17
    %s20 = sphi 0, %s18
    %s21 = sphi 0, %s19
    %s33 = sphi 0, %s35
    %s36 = sphi 0, %s33
    %s37 = sphi 0, %s36
    %s53 = sphi 0, %s37
    %s61 = sphi 0, %s63
    %s64 = sphi 0, %s61
    %s65 = sphi 0, %s64
    %s81 = sphi 0, %s65
    %s89 = sphi 0, %s91
    %s92 = sphi 0, %s89
    %s93 = sphi 0, %s92
    %s109 = sphi 0, %s93
    %s117 = sphi 0, %s119
    %s120 = sphi 0, %s117
    %s121 = sphi 0, %s120
    %s137 = sphi 0, %s121
  $region4: #{transformer_forward.11} parent=0 // loop_header_branch
    %12 = sbr.rel (%p10) target = $region8
  $region5: #{transformer_forward.11} parent=0 // loop_body
    %s14 = ssub.s32 %s9, 1
    %s15 = ssub.s32 %s9, 2
    %s22 = sadd.s32 1, %s17
    %p23 = scmp.ge.s32.totalorder %s22, 1
    %s24 = scalar_select %p23, 0, %s22
    %s25 = sadd.s32 1, %s16
    %s26 = scalar_select %p23, %s25, %s16
    %p27 = scmp.ge.s32.totalorder %s26, 2
    %s28 = scalar_select %p27, 0, %s26
    %s29 = ssub.s32 %s16, %s28
    %s30 = ssub.s32 %s17, %s24
    %s31 = sor.u32 %s29, %s30
    %p32 = scmp.eq.s32.totalorder %s31, 0
    %s34 = sadd.s32 %s33, 1
    %s35 = scalar_select %p32, %s33, %s34
    %p38 = pneg %p32
    %p39 = scmp.eq.s32.totalorder %s9, 1
    %p40 = por %p38, %p39
    %p41 = scmp.ne.s32.totalorder %s33, %s36
    %p42 = scmp.eq.s32.totalorder %s9, 0
    %p43 = por %p41, %p42
    %p44 = scmp.ne.s32.totalorder %s33, %s36
    %p45 = scmp.eq.s32.totalorder %s14, 1
    %p46 = por %p44, %p45
    %p47 = scmp.ne.s32.totalorder %s36, %s37
    %p48 = scmp.eq.s32.totalorder %s14, 0
    %p49 = por %p47, %p48
    %p50 = scmp.ne.s32.totalorder %s36, %s37
    %p51 = scmp.eq.s32.totalorder %s15, 1
    %p52 = por %p50, %p51
    %p54 = scmp.ne.s32.totalorder %s37, %s53
    %p55 = scmp.eq.s32.totalorder %s15, 0
    %p56 = por %p54, %p55
    %s57 = ssub.s32 %s16, %s28
    %s58 = ssub.s32 %s17, %s24
    %s59 = sor.u32 %s57, %s58
    %p60 = scmp.eq.s32.totalorder %s59, 0
    %s62 = sadd.s32 %s61, 1
    %s63 = scalar_select %p60, %s61, %s62
    %p66 = pneg %p60
    %p67 = scmp.eq.s32.totalorder %s9, 1
    %p68 = por %p66, %p67
    %p69 = scmp.ne.s32.totalorder %s61, %s64
    %p70 = scmp.eq.s32.totalorder %s9, 0
    %p71 = por %p69, %p70
    %p72 = scmp.ne.s32.totalorder %s61, %s64
    %p73 = scmp.eq.s32.totalorder %s14, 1
    %p74 = por %p72, %p73
    %p75 = scmp.ne.s32.totalorder %s64, %s65
    %p76 = scmp.eq.s32.totalorder %s14, 0
    %p77 = por %p75, %p76
    %p78 = scmp.ne.s32.totalorder %s64, %s65
    %p79 = scmp.eq.s32.totalorder %s15, 1
    %p80 = por %p78, %p79
    %p82 = scmp.ne.s32.totalorder %s65, %s81
    %p83 = scmp.eq.s32.totalorder %s15, 0
    %p84 = por %p82, %p83
    %s85 = ssub.s32 %s16, %s28
    %s86 = ssub.s32 %s17, %s24
    %s87 = sor.u32 %s85, %s86
    %p88 = scmp.eq.s32.totalorder %s87, 0
    %s90 = sadd.s32 %s89, 1
    %s91 = scalar_select %p88, %s89, %s90
    %p94 = pneg %p88
    %p95 = scmp.eq.s32.totalorder %s9, 1
    %p96 = por %p94, %p95
    %p97 = scmp.ne.s32.totalorder %s89, %s92
    %p98 = scmp.eq.s32.totalorder %s9, 0
    %p99 = por %p97, %p98
    %p100 = scmp.ne.s32.totalorder %s89, %s92
    %p101 = scmp.eq.s32.totalorder %s14, 1
    %p102 = por %p100, %p101
    %p103 = scmp.ne.s32.totalorder %s92, %s93
    %p104 = scmp.eq.s32.totalorder %s14, 0
    %p105 = por %p103, %p104
    %p106 = scmp.ne.s32.totalorder %s92, %s93
    %p107 = scmp.eq.s32.totalorder %s15, 1
    %p108 = por %p106, %p107
    %p110 = scmp.ne.s32.totalorder %s93, %s109
    %p111 = scmp.eq.s32.totalorder %s15, 0
    %p112 = por %p110, %p111
    %s113 = ssub.s32 %s16, %s28
    %s114 = ssub.s32 %s17, %s24
    %s115 = sor.u32 %s113, %s114
    %p116 = scmp.eq.s32.totalorder %s115, 0
    %s118 = sadd.s32 %s117, 1
    %s119 = scalar_select %p116, %s117, %s118
    %p122 = pneg %p116
    %p123 = scmp.eq.s32.totalorder %s9, 1
    %p124 = por %p122, %p123
    %p125 = scmp.ne.s32.totalorder %s117, %s120
    %p126 = scmp.eq.s32.totalorder %s9, 0
    %p127 = por %p125, %p126
    %p128 = scmp.ne.s32.totalorder %s117, %s120
    %p129 = scmp.eq.s32.totalorder %s14, 1
    %p130 = por %p128, %p129
    %p131 = scmp.ne.s32.totalorder %s120, %s121
    %p132 = scmp.eq.s32.totalorder %s14, 0
    %p133 = por %p131, %p132
    %p134 = scmp.ne.s32.totalorder %s120, %s121
    %p135 = scmp.eq.s32.totalorder %s15, 1
    %p136 = por %p134, %p135
    %p138 = scmp.ne.s32.totalorder %s121, %s137
    %p139 = scmp.eq.s32.totalorder %s15, 0
    %p140 = por %p138, %p139
    %p141 = scmp.le.s32.totalorder 1, %s9
    %p142 = scmp.lt.s32.totalorder %s9, 3
    %p143 = pnand %p141, %p142
    %p144 = pneg %p143
    // Predicated region
    $region9: #{transformer_forward.11} parent=5 // pred_check
      _
    $region10: #{transformer_forward.11} parent=5 // pred_check_branch
      %146 = sbr.rel (%p143) target = $region12
    $region11: #{transformer_forward.11} parent=5 // pred_region
      %s147 = ssub.s32 %s9, 1
    $region12: #{transformer_forward.11} parent=5 // pred_fallthru
      _
    %p148 = scmp.lt.s32.totalorder %s9, 2
    // Predicated region
    $region13: #{transformer_forward.11} parent=5 // pred_check
      %p149 = pneg %p148
    $region14: #{transformer_forward.11} parent=5 // pred_check_branch
      %151 = sbr.rel (%p149) target = $region16
    $region15: #{transformer_forward.11} parent=5 // pred_region
      // Predicated region
      $region17: #{transformer_forward.11} parent=15 // pred_check
        %p152 = pneg %p43
      $region18: #{transformer_forward.11} parent=15 // pred_check_branch
        %154 = sbr.rel (%p152) target = $region20
      $region19: #{transformer_forward.11} parent=15 // pred_region
        %p155 = scmp.lt.s32.totalorder %s16, 1
        %s156 = scalar_select %p155, %s16, 1
        %p157 = scmp.lt.s32.totalorder %s17, 0
        %s158 = scalar_select %p157, %s17, 0
        %s159 = sadd.s32 %s158, %s156
        %s160 = smul.addr %s159, 4
        %s161 = scalar_lea.vmem %s0, %s160
      $region20: #{transformer_forward.11} parent=15 // pred_fallthru
        _
      // Predicated region
      $region21: #{transformer_forward.11} parent=15 // pred_check
        %p162 = pneg %p71
      $region22: #{transformer_forward.11} parent=15 // pred_check_branch
        %164 = sbr.rel (%p162) target = $region24
      $region23: #{transformer_forward.11} parent=15 // pred_region
        %p165 = scmp.lt.s32.totalorder %s16, 1
        %s166 = scalar_select %p165, %s16, 1
        %p167 = scmp.lt.s32.totalorder %s17, 0
        %s168 = scalar_select %p167, %s17, 0
        %s169 = sadd.s32 %s168, %s166
        %s170 = smul.addr %s169, 4
        %s171 = scalar_lea.vmem %s1, %s170
      $region24: #{transformer_forward.11} parent=15 // pred_fallthru
        _
      // Predicated region
      $region25: #{transformer_forward.11} parent=15 // pred_check
        %p172 = pneg %p99
      $region26: #{transformer_forward.11} parent=15 // pred_check_branch
        %174 = sbr.rel (%p172) target = $region28
      $region27: #{transformer_forward.11} parent=15 // pred_region
        %p175 = scmp.lt.s32.totalorder %s16, 1
        %s176 = scalar_select %p175, %s16, 1
        %p177 = scmp.lt.s32.totalorder %s17, 0
        %s178 = scalar_select %p177, %s17, 0
        %s179 = sadd.s32 %s178, %s176
        %s180 = smul.addr %s179, 4
        %s181 = scalar_lea.vmem %s2, %s180
      $region28: #{transformer_forward.11} parent=15 // pred_fallthru
        _
    $region16: #{transformer_forward.11} parent=5 // pred_fallthru
      _
    %p182 = scmp.le.s32.totalorder 1, %s9
    %p183 = scmp.lt.s32.totalorder %s9, 3
    %p184 = pnand %p182, %p183
    %p185 = pneg %p184
    // Predicated region
    $region29: #{transformer_forward.11} parent=5 // pred_check
      _
    $region30: #{transformer_forward.11} parent=5 // pred_check_branch
      %187 = sbr.rel (%p184) target = $region32
    $region31: #{transformer_forward.11} parent=5 // pred_region
      %s188 = ssub.s32 %s9, 1
      %p189 = scmp.lt.s32.totalorder %s18, 1
      %s190 = scalar_select %p189, %s18, 1
      %p191 = scmp.lt.s32.totalorder %s19, 0
      %s192 = scalar_select %p191, %s19, 0
      %s193 = sadd.s32 %s192, %s190
      %s194 = smul.addr %s193, 4
      %s195 = scalar_lea.vmem %s0, %s194
      %p196 = pneg %p49
      %p197 = pneg %p46
      %p198 = scmp.lt.s32.totalorder %s18, 1
      %s199 = scalar_select %p198, %s18, 1
      %p200 = scmp.lt.s32.totalorder %s19, 0
      %s201 = scalar_select %p200, %s19, 0
      %s202 = sadd.s32 %s201, %s199
      %s203 = smul.addr %s202, 4
      %s204 = scalar_lea.vmem %s1, %s203
      %p205 = pneg %p77
      %p206 = pneg %p74
      %p207 = scmp.lt.s32.totalorder %s18, 1
      %s208 = scalar_select %p207, %s18, 1
      %p209 = scmp.lt.s32.totalorder %s19, 0
      %s210 = scalar_select %p209, %s19, 0
      %s211 = sadd.s32 %s210, %s208
      %s212 = smul.addr %s211, 4
      %s213 = scalar_lea.vmem %s2, %s212
      %p214 = pneg %p105
      %p215 = pneg %p102
      %p216 = pneg %p133
      %p217 = pneg %p130
      %p218 = scmp.lt.s32.totalorder %s18, 1
      %s219 = scalar_select %p218, %s18, 1
      %p220 = scmp.lt.s32.totalorder %s19, 0
      %s221 = scalar_select %p220, %s19, 0
      %s222 = sadd.s32 %s221, %s219
      %s223 = smul.addr %s222, 4
      %s224 = scalar_lea.vmem %s3, %s223
      %p225 = scmp.lt.s32.totalorder %s18, 1
      %s226 = scalar_select %p225, %s18, 1
      %p227 = scmp.lt.s32.totalorder %s19, 0
      %s228 = scalar_select %p227, %s19, 0
      %s229 = sadd.s32 %s228, %s226
      %s230 = smul.addr %s229, 4
      %s231 = scalar_lea.vmem %s0, %s230
      %p232 = scmp.lt.s32.totalorder %s18, 1
      %s233 = scalar_select %p232, %s18, 1
      %p234 = scmp.lt.s32.totalorder %s19, 0
      %s235 = scalar_select %p234, %s19, 0
      %s236 = sadd.s32 %s235, %s233
      %s237 = smul.addr %s236, 4
      %s238 = scalar_lea.vmem %s1, %s237
      %p239 = scmp.lt.s32.totalorder %s18, 1
      %s240 = scalar_select %p239, %s18, 1
      %p241 = scmp.lt.s32.totalorder %s19, 0
      %s242 = scalar_select %p241, %s19, 0
      %s243 = sadd.s32 %s242, %s240
      %s244 = smul.addr %s243, 4
      %s245 = scalar_lea.vmem %s2, %s244
      %p246 = scmp.lt.s32.totalorder %s18, 1
      %s247 = scalar_select %p246, %s18, 1
      %p248 = scmp.lt.s32.totalorder %s19, 0
      %s249 = scalar_select %p248, %s19, 0
      %s250 = sadd.s32 %s249, %s247
      %s251 = smul.addr %s250, 4
      %s252 = scalar_lea.vmem %s3, %s251
      %v254 = vld [vmem:[%s231] sm:$0xf]
      %v255 = vld [vmem:[%s238] sm:$0xf]
      %v256 = vld [vmem:[%s245] sm:$0xf]
      %v257 = vlaneseq
      %v258 = vshrl.u32 %v257, 7
      %v259 = vlaneseq
      %v260 = vand.u32 %v259, 127
      %vm261 = vcmp.le.s32.totalorder %v260, %v258
      %v262 = vsel %vm261, 0.0, -inf
      %vm263 = vcmask 130048
      %v265 = vsel %vm263, %v254, 0
      %v268 = vsel %vm263, %v255, 0
      %270 = vmatpush.bf16.xpose.msra.mxu0 0
      %271 = vmatpush.bf16.xpose.msra.mxu0 0
      %272 = vmatpush.bf16.xpose.msra.mxu0 0
      %273 = vmatpush.bf16.xpose.msra.mxu0 0
      %274 = vmatpush.bf16.xpose.msra.mxu0 0
      %275 = vmatpush.bf16.xpose.msra.mxu0 0
      %276 = vmatpush.bf16.xpose.msra.mxu0 0
      %277 = vmatpush.bf16.xpose.msra.mxu0 %v268
      %278 = vmatmul.bf16.gmra.mxu0 %v265
      %v279 = vpop.f32.mrf.mxu0
      %v280 = vadd.f32 0.0, %v279
      %v281 = vpop.f32.mrf.mxu0
      %282 = vdwg.mxu0
      %v283 = vmul.f32 %v280, 0.25
      %v284 = vadd.f32 %v283, %v262
      %vm285 = vcmask 64512
      %v286 = vsel %vm285, %v284, -inf
      %287 = vmax.xlane.f32.xlu0 %v286
      %v288 = vpop.xlane.xlu0 %287
      %v289 = vsub.f32 %v284, %v288
      %v290 = vmul.f32 %v289, 1.442695
      %v291 = vpow.pop %v290
      %v292 = vsel %vm285, %v291, 0.0
      %293 = vadd.xlane.f32.xlu0 %v292
      %v294 = vpop.xlane.xlu0 %293
      %v295 = vpack.c.bf16 %v291, %v291
      %v297 = vsel %vm285, %v295, 0
      %vm299 = vcmask 1043456
      %v301 = vsel %vm299, %v256, 0
      %303 = vmatpush.bf16.msra.mxu0 0
      %304 = vmatpush.bf16.msra.mxu0 0
      %305 = vmatpush.bf16.msra.mxu0 0
      %306 = vmatpush.bf16.msra.mxu0 0
      %307 = vmatpush.bf16.msra.mxu0 0
      %308 = vmatpush.bf16.msra.mxu0 0
      %309 = vmatpush.bf16.msra.mxu0 0
      %310 = vmatpush.bf16.msra.mxu0 %v301
      %311 = vmatmul.bf16.gmra.mxu0 %v297
      %v312 = vpop.f32.mrf.mxu0
      %v313 = vadd.f32 0.0, %v312
      %v314 = vpop.f32.mrf.mxu0
      %315 = vdwg.mxu0
      %v316 = vrcp.pop %v294
      %v317 = vmul.f32 %v313, %v316
      %v318 = vpack.c.bf16 %v317, %v317
      %vm319 = vcmask 125952
      %320 = vst.msk [vmem:[%s252] sm:$0xf] %vm319, %v318
      %v322 = vunpack.c.l.b16 %v254
      %v323 = vpack.c.b16 %v322, %v322
      %324 = vrot.lane.b32.xlu0 %v323, 112
      %v325 = vpop.permute.xlu0 %324
      %v327 = vsel %vm263, %v325, 0
      %329 = vmatpush.bf16.xpose.msra.mxu0 0
      %330 = vmatpush.bf16.xpose.msra.mxu0 0
      %331 = vmatpush.bf16.xpose.msra.mxu0 0
      %332 = vmatpush.bf16.xpose.msra.mxu0 0
      %333 = vmatpush.bf16.xpose.msra.mxu0 0
      %334 = vmatpush.bf16.xpose.msra.mxu0 0
      %335 = vmatpush.bf16.xpose.msra.mxu0 0
      %336 = vmatpush.bf16.xpose.msra.mxu0 %v268
      %337 = vmatmul.bf16.gmra.mxu0 %v327
      %v338 = vpop.f32.mrf.mxu0
      %v339 = vadd.f32 0.0, %v338
      %v340 = vpop.f32.mrf.mxu0
      %341 = vdwg.mxu0
      %v342 = vmul.f32 %v339, 0.25
      %v343 = vadd.f32 %v342, %v262
      %v344 = vsel %vm285, %v343, -inf
      %345 = vmax.xlane.f32.xlu0 %v344
      %v346 = vpop.xlane.xlu0 %345
      %v347 = vsub.f32 %v343, %v346
      %v348 = vmul.f32 %v347, 1.442695
      %v349 = vpow.pop %v348
      %v350 = vsel %vm285, %v349, 0.0
      %351 = vadd.xlane.f32.xlu0 %v350
      %v352 = vpop.xlane.xlu0 %351
      %v353 = vpack.c.bf16 %v349, %v349
      %v355 = vsel %vm285, %v353, 0
      %357 = vmatpush.bf16.msra.mxu0 0
      %358 = vmatpush.bf16.msra.mxu0 0
      %359 = vmatpush.bf16.msra.mxu0 0
      %360 = vmatpush.bf16.msra.mxu0 0
      %361 = vmatpush.bf16.msra.mxu0 0
      %362 = vmatpush.bf16.msra.mxu0 0
      %363 = vmatpush.bf16.msra.mxu0 0
      %364 = vmatpush.bf16.msra.mxu0 %v301
      %365 = vmatmul.bf16.gmra.mxu0 %v355
      %v366 = vpop.f32.mrf.mxu0
      %v367 = vadd.f32 0.0, %v366
      %v368 = vpop.f32.mrf.mxu0
      %369 = vdwg.mxu0
      %v370 = vrcp.pop %v352
      %v371 = vmul.f32 %v367, %v370
      %v372 = vpack.c.bf16 %v371, %v371
      %374 = vrot.lane.b32.xlu0 %v372, 16
      %v375 = vpop.permute.xlu0 %374
      %vm377 = vcmask 257152
      %378 = vst.msk [vmem:[%s252] sm:$0xf] %vm377, %v375
      %379 = vrot.lane.b32.xlu0 %v323, 96
      %v380 = vpop.permute.xlu0 %379
      %v382 = vunpack.c.l.b16 %v255
      %v383 = vpack.c.b16 %v382, %v382
      %384 = vrot.lane.b32.xlu0 %v383, 112
      %v385 = vpop.permute.xlu0 %384
      %v387 = vsel %vm263, %v380, 0
      %v390 = vsel %vm263, %v385, 0
      %392 = vmatpush.bf16.xpose.msra.mxu0 0
      %393 = vmatpush.bf16.xpose.msra.mxu0 0
      %394 = vmatpush.bf16.xpose.msra.mxu0 0
      %395 = vmatpush.bf16.xpose.msra.mxu0 0
      %396 = vmatpush.bf16.xpose.msra.mxu0 0
      %397 = vmatpush.bf16.xpose.msra.mxu0 0
      %398 = vmatpush.bf16.xpose.msra.mxu0 0
      %399 = vmatpush.bf16.xpose.msra.mxu0 %v390
      %400 = vmatmul.bf16.gmra.mxu0 %v387
      %v401 = vpop.f32.mrf.mxu0
      %v402 = vadd.f32 0.0, %v401
      %v403 = vpop.f32.mrf.mxu0
      %404 = vdwg.mxu0
      %v405 = vmul.f32 %v402, 0.25
      %v406 = vadd.f32 %v405, %v262
      %v407 = vsel %vm285, %v406, -inf
      %408 = vmax.xlane.f32.xlu0 %v407
      %v409 = vpop.xlane.xlu0 %408
      %v410 = vsub.f32 %v406, %v409
      %v411 = vmul.f32 %v410, 1.442695
      %v412 = vpow.pop %v411
      %v413 = vsel %vm285, %v412, 0.0
      %414 = vadd.xlane.f32.xlu0 %v413
      %v415 = vpop.xlane.xlu0 %414
      %v416 = vpack.c.bf16 %v412, %v412
      %v418 = vunpack.c.l.b16 %v256
      %v419 = vpack.c.b16 %v418, %v418
      %420 = vrot.lane.b32.xlu0 %v419, 112
      %v421 = vpop.permute.xlu0 %420
      %v423 = vsel %vm285, %v416, 0
      %v426 = vsel %vm299, %v421, 0
      %428 = vmatpush.bf16.msra.mxu0 0
      %429 = vmatpush.bf16.msra.mxu0 0
      %430 = vmatpush.bf16.msra.mxu0 0
      %431 = vmatpush.bf16.msra.mxu0 0
      %432 = vmatpush.bf16.msra.mxu0 0
      %433 = vmatpush.bf16.msra.mxu0 0
      %434 = vmatpush.bf16.msra.mxu0 0
      %435 = vmatpush.bf16.msra.mxu0 %v426
      %436 = vmatmul.bf16.gmra.mxu0 %v423
      %v437 = vpop.f32.mrf.mxu0
      %v438 = vadd.f32 0.0, %v437
      %v439 = vpop.f32.mrf.mxu0
      %440 = vdwg.mxu0
      %v441 = vrcp.pop %v415
      %v442 = vmul.f32 %v438, %v441
      %v443 = vpack.c.bf16 %v442, %v442
      %445 = vrot.lane.b32.xlu0 %v443, 32
      %v446 = vpop.permute.xlu0 %445
      %vm448 = vcmask 388352
      %449 = vst.msk [vmem:[%s252] sm:$0xf] %vm448, %v446
      %450 = vrot.lane.b32.xlu0 %v323, 80
      %v451 = vpop.permute.xlu0 %450
      %v453 = vsel %vm263, %v451, 0
      %455 = vmatpush.bf16.xpose.msra.mxu0 0
      %456 = vmatpush.bf16.xpose.msra.mxu0 0
      %457 = vmatpush.bf16.xpose.msra.mxu0 0
      %458 = vmatpush.bf16.xpose.msra.mxu0 0
      %459 = vmatpush.bf16.xpose.msra.mxu0 0
      %460 = vmatpush.bf16.xpose.msra.mxu0 0
      %461 = vmatpush.bf16.xpose.msra.mxu0 0
      %462 = vmatpush.bf16.xpose.msra.mxu0 %v390
      %463 = vmatmul.bf16.gmra.mxu0 %v453
      %v464 = vpop.f32.mrf.mxu0
      %v465 = vadd.f32 0.0, %v464
      %v466 = vpop.f32.mrf.mxu0
      %467 = vdwg.mxu0
      %v468 = vmul.f32 %v465, 0.25
      %v469 = vadd.f32 %v468, %v262
      %v470 = vsel %vm285, %v469, -inf
      %471 = vmax.xlane.f32.xlu0 %v470
      %v472 = vpop.xlane.xlu0 %471
      %v473 = vsub.f32 %v469, %v472
      %v474 = vmul.f32 %v473, 1.442695
      %v475 = vpow.pop %v474
      %v476 = vsel %vm285, %v475, 0.0
      %477 = vadd.xlane.f32.xlu0 %v476
      %v478 = vpop.xlane.xlu0 %477
      %v479 = vpack.c.bf16 %v475, %v475
      %v481 = vsel %vm285, %v479, 0
      %483 = vmatpush.bf16.msra.mxu0 0
      %484 = vmatpush.bf16.msra.mxu0 0
      %485 = vmatpush.bf16.msra.mxu0 0
      %486 = vmatpush.bf16.msra.mxu0 0
      %487 = vmatpush.bf16.msra.mxu0 0
      %488 = vmatpush.bf16.msra.mxu0 0
      %489 = vmatpush.bf16.msra.mxu0 0
      %490 = vmatpush.bf16.msra.mxu0 %v426
      %491 = vmatmul.bf16.gmra.mxu0 %v481
      %v492 = vpop.f32.mrf.mxu0
      %v493 = vadd.f32 0.0, %v492
      %v494 = vpop.f32.mrf.mxu0
      %495 = vdwg.mxu0
      %v496 = vrcp.pop %v478
      %v497 = vmul.f32 %v493, %v496
      %v498 = vpack.c.bf16 %v497, %v497
      %500 = vrot.lane.b32.xlu0 %v498, 48
      %v501 = vpop.permute.xlu0 %500
      %vm503 = vcmask 519552
      %504 = vst.msk [vmem:[%s252] sm:$0xf] %vm503, %v501
      %p505 = scmp.lt.s32.totalorder %s18, 1
      %s506 = scalar_select %p505, %s18, 1
      %p507 = scmp.lt.s32.totalorder %s19, 0
      %s508 = scalar_select %p507, %s19, 0
      %s509 = sadd.s32 %s508, %s506
      %s510 = smul.addr %s509, 4
      %s511 = scalar_lea.vmem %s3, %s510
      // Predicated region
      $region33: #{transformer_forward.11} parent=31 // pred_check
        %p512 = pneg %p130
      $region34: #{transformer_forward.11} parent=31 // pred_check_branch
        %514 = sbr.rel (%p512) target = $region36
      $region35: #{transformer_forward.11} parent=31 // pred_region
        _
      $region36: #{transformer_forward.11} parent=31 // pred_fallthru
        _
    $region32: #{transformer_forward.11} parent=5 // pred_fallthru
      _
    %p515 = scmp.le.s32.totalorder 2, %s9
    // Predicated region
    $region37: #{transformer_forward.11} parent=5 // pred_check
      %p516 = pneg %p515
    $region38: #{transformer_forward.11} parent=5 // pred_check_branch
      %518 = sbr.rel (%p516) target = $region40
    $region39: #{transformer_forward.11} parent=5 // pred_region
      %s519 = ssub.s32 %s9, 2
      // Predicated region
      $region41: #{transformer_forward.11} parent=39 // pred_check
        %p520 = pneg %p136
      $region42: #{transformer_forward.11} parent=39 // pred_check_branch
        %522 = sbr.rel (%p520) target = $region44
      $region43: #{transformer_forward.11} parent=39 // pred_region
        %p523 = scmp.lt.s32.totalorder %s20, 1
        %s524 = scalar_select %p523, %s20, 1
        %p525 = scmp.lt.s32.totalorder %s21, 0
        %s526 = scalar_select %p525, %s21, 0
        %s527 = sadd.s32 %s526, %s524
        %s528 = smul.addr %s527, 4
        %s529 = scalar_lea.vmem %s3, %s528
      $region44: #{transformer_forward.11} parent=39 // pred_fallthru
        _
    $region40: #{transformer_forward.11} parent=5 // pred_fallthru
      _
  $region6: #{transformer_forward.11} parent=0 // loop_footer
    %s13 = sadd.s32 1, %s9
  $region7: #{transformer_forward.11} parent=0 // loop_footer_branch
    %8 = sbr.rel target = $region3
  $region8: #{transformer_forward.11} parent=0 // loop_exit
    _

// kernel: transformer_forward.12
$region0: #{transformer_forward.12}
  #allocation0 [shape = 'u32[]', space=smem, size = 0x4, offset = 0x4, fixed_abs, tag = 'smem constant byte address 0x4 - core index']
  #allocation1 [shape = 'u32[72,128]{1,0:T(1,128)}', space=vmem, size = 0x9000, scoped, tag = 'internal scratch']
  #allocation2 [shape = 'f32[16,64]{1,0:T(8,128)}', space=vmem, size = 0x2000, scoped, tag = 'scratch operand']
  %s0 = inlined_call_operand.vmem [shape: bf16[16,64], index: 0, kind: input, shape index: {}]
  %s1 = inlined_call_operand.vmem [shape: bf16[64,64], index: 1, kind: input, shape index: {}]
  %s2 = inlined_call_operand.vmem [shape: bf16[16,64], index: 2, kind: input, shape index: {}]
  %s3 = inlined_call_operand.vmem [shape: f32[1,64], index: 3, kind: input, shape index: {}]
  %s4 = inlined_call_operand.vmem [shape: bf16[16,64], index: 4, kind: output, shape index: {0}]
  %s5 = inlined_call_operand.vmem [shape: bf16[16,64], index: 5, kind: output, shape index: {1}]
  %6 = xla_tuple %s4, %s5
  %s7 = sld [smem:[#allocation0]]
  $region42: #{transformer_forward.12} parent=0
    _
  %s9 = ssub.s32 1, %s7
  %s10 = scalar_select 0, %s9, %s7
  // Predicated region
  $region2: #{transformer_forward.12} parent=0 // pred_check
    _
  $region3: #{transformer_forward.12} parent=0 // pred_check_branch
    %12 = sbr.rel (0) target = $region5
  $region4: #{transformer_forward.12} parent=0 // pred_region
    _
  $region5: #{transformer_forward.12} parent=0 // pred_fallthru
    _
  // Predicated region
  $region6: #{transformer_forward.12} parent=0 // pred_check
    _
  $region7: #{transformer_forward.12} parent=0 // pred_check_branch
    %14 = sbr.rel (0) target = $region9
  $region8: #{transformer_forward.12} parent=0 // pred_region
    _
  $region9: #{transformer_forward.12} parent=0 // pred_fallthru
    _
  // Predicated region
  $region10: #{transformer_forward.12} parent=0 // pred_check
    _
  $region11: #{transformer_forward.12} parent=0 // pred_check_branch
    %16 = sbr.rel (0) target = $region13
  $region12: #{transformer_forward.12} parent=0 // pred_region
    _
  $region13: #{transformer_forward.12} parent=0 // pred_fallthru
    _
  // Predicated region
  $region14: #{transformer_forward.12} parent=0 // pred_check
    _
  $region15: #{transformer_forward.12} parent=0 // pred_check_branch
    %18 = sbr.rel (0) target = $region17
  $region16: #{transformer_forward.12} parent=0 // pred_region
    _
  $region17: #{transformer_forward.12} parent=0 // pred_fallthru
    _
  %p20 = scmp.eq.s32.totalorder 0, 0
  // Predicated region
  $region18: #{transformer_forward.12} parent=0 // pred_check
    %p21 = pneg %p20
  $region19: #{transformer_forward.12} parent=0 // pred_check_branch
    %23 = sbr.rel (%p21) target = $region21
  $region20: #{transformer_forward.12} parent=0 // pred_region
    %vm24 = vcmask 523264
    %25 = vst.msk [vmem:[#allocation2] sm:$0xff] %vm24, 0.0
    %26 = vst.msk [vmem:[#allocation2 + $0x8] sm:$0xff] %vm24, 0.0
  $region21: #{transformer_forward.12} parent=0 // pred_fallthru
    _
  %v27 = vld [vmem:[#allocation2] sm:$0xff]
  %v28 = vld [vmem:[#allocation2 + $0x8] sm:$0xff]
  %v29 = vld [vmem:[%s0] sm:$0xf]
  %v30 = vld [vmem:[%s0 + $0x4] sm:$0xf]
  %v31 = vld [vmem:[%s1] sm:$0xf]
  %v32 = vld [vmem:[%s1 + $0x4] sm:$0xf]
  %v33 = vld [vmem:[%s1 + $0x8] sm:$0xf]
  %v34 = vld [vmem:[%s1 + $0xc] sm:$0xf]
  %v35 = vld [vmem:[%s1 + $0x10] sm:$0xf]
  %v36 = vld [vmem:[%s1 + $0x14] sm:$0xf]
  %v37 = vld [vmem:[%s1 + $0x18] sm:$0xf]
  %v38 = vld [vmem:[%s1 + $0x1c] sm:$0xf]
  %v41 = vunpack.c.l.b16 %v29
  %v42 = vunpack.c.l.b16 %v30
  %v43 = vpack.c.b16 %v42, %v41
  %v52 = vunpack.c.l.b16 %v31
  %v53 = vunpack.c.l.b16 %v32
  %v54 = vunpack.c.l.b16 %v33
  %v55 = vunpack.c.l.b16 %v34
  %v56 = vunpack.c.l.b16 %v35
  %v57 = vunpack.c.l.b16 %v36
  %v58 = vunpack.c.l.b16 %v37
  %v59 = vunpack.c.l.b16 %v38
  %v60 = vpack.c.b16 %v53, %v52
  %v61 = vpack.c.b16 %v55, %v54
  %v62 = vpack.c.b16 %v57, %v56
  %v63 = vpack.c.b16 %v59, %v58
  %vm68 = vcmask 523264
  %v70 = vsel %vm68, %v43, 0
  %72 = vmatpush.bf16.msra.mxu0 0
  %73 = vmatpush.bf16.msra.mxu0 0
  %74 = vmatpush.bf16.msra.mxu0 0
  %75 = vmatpush.bf16.msra.mxu0 0
  %76 = vmatpush.bf16.msra.mxu0 %v63
  %77 = vmatpush.bf16.msra.mxu0 %v62
  %78 = vmatpush.bf16.msra.mxu0 %v61
  %79 = vmatpush.bf16.msra.mxu0 %v60
  %80 = vmatmul.bf16.gmra.mxu0 %v70
  %v81 = vpop.f32.mrf.mxu0
  %v82 = vadd.f32 0.0, %v81
  %v83 = vpop.f32.mrf.mxu0
  %v84 = vadd.f32 0.0, %v83
  %85 = vdwg.mxu0
  %v86 = vadd.f32 %v27, %v82
  %v87 = vadd.f32 %v28, %v84
  %88 = vst.msk [vmem:[#allocation2] sm:$0xff] %vm68, %v86
  %89 = vst.msk [vmem:[#allocation2 + $0x8] sm:$0xff] %vm68, %v87
  // Predicated region
  $region22: #{transformer_forward.12} parent=0 // pred_check
    %p90 = pneg %p20
  $region23: #{transformer_forward.12} parent=0 // pred_check_branch
    %92 = sbr.rel (%p90) target = $region25
  $region24: #{transformer_forward.12} parent=0 // pred_region
    %v93 = vld [vmem:[%s2] sm:$0xf]
    %v94 = vld [vmem:[%s2 + $0x4] sm:$0xf]
    %v95 = vunpack.c.l.bf16 %v93
    %v96 = vunpack.c.l.bf16 %v94
    %v97 = vld [vmem:[#allocation2] sm:$0xff]
    %v98 = vld [vmem:[#allocation2 + $0x8] sm:$0xff]
    %v99 = vadd.f32 %v95, %v97
    %v100 = vadd.f32 %v96, %v98
    %v101 = vpack.c.bf16 %v99, %v99
    %v102 = vpack.c.bf16 %v100, %v100
    %vm103 = vcmask 519168
    %104 = vst.msk [vmem:[%s4] sm:$0xf] %vm103, %v101
    %105 = vst.msk [vmem:[%s4 + $0x4] sm:$0xf] %vm103, %v102
    %v106 = vmul.f32 %v99, %v99
    %v107 = vmul.f32 %v100, %v100
    %v108 = vsel %vm68, %v106, 0.0
    %109 = vadd.xlane.f32.xlu0 %v108
    %v110 = vpop.xlane.xlu0 %109
    %v111 = vsel %vm68, %v107, 0.0
    %112 = vadd.xlane.f32.xlu0 %v111
    %v113 = vpop.xlane.xlu0 %112
    %v114 = vrcp.pop 64.0
    %v115 = vmul.f32 64.0, %v114
    %v116 = vsub.f32 1.0, %v115
    %v117 = vmul.f32 %v114, %v116
    %v118 = vadd.f32 %v114, %v117
    %vm119 = vweird.f32 %v114
    %v120 = vsel %vm119, %v114, %v118
    %v121 = vmul.f32 %v110, %v120
    %v122 = vmul.f32 %v113, %v120
    %v123 = vadd.f32 %v121, 1e-05
    %v124 = vadd.f32 %v122, 1e-05
    %v125 = vrsqrt.pop %v123
    %v126 = vmul.f32 %v125, %v123
    %v127 = vmul.f32 %v126, %v125
    %v128 = vmul.f32 0.5, %v127
    %v129 = vsub.f32 1.5, %v128
    %v130 = vmul.f32 %v125, %v129
    %vm131 = vweird.f32 %v123
    %vm132 = vweird.f32 %v125
    %vm133 = vmor %vm131, %vm132
    %v134 = vsel %vm133, %v125, %v130
    %v135 = vrsqrt.pop %v124
    %v136 = vmul.f32 %v135, %v124
    %v137 = vmul.f32 %v136, %v135
    %v138 = vmul.f32 0.5, %v137
    %v139 = vsub.f32 1.5, %v138
    %v140 = vmul.f32 %v135, %v139
    %vm141 = vweird.f32 %v124
    %vm142 = vweird.f32 %v135
    %vm143 = vmor %vm141, %vm142
    %v144 = vsel %vm143, %v135, %v140
    %v145 = vmul.f32 %v99, %v134
    %v146 = vmul.f32 %v100, %v144
    %v147 = vld [vmem:[%s3] sm:$0x1]
    %v149 = vperm.slane %v147, 0
    %v151 = vmul.f32 %v145, %v149
    %v152 = vmul.f32 %v146, %v149
    %v153 = vpack.c.bf16 %v151, %v151
    %v154 = vpack.c.bf16 %v152, %v152
    %155 = vst.msk [vmem:[%s5] sm:$0xf] %vm103, %v153
    %156 = vst.msk [vmem:[%s5 + $0x4] sm:$0xf] %vm103, %v154
  $region25: #{transformer_forward.12} parent=0 // pred_fallthru
    _
  // Predicated region
  $region26: #{transformer_forward.12} parent=0 // pred_check
    _
  $region27: #{transformer_forward.12} parent=0 // pred_check_branch
    %158 = sbr.rel (0) target = $region29
  $region28: #{transformer_forward.12} parent=0 // pred_region
    _
  $region29: #{transformer_forward.12} parent=0 // pred_fallthru
    _
  // Predicated region
  $region30: #{transformer_forward.12} parent=0 // pred_check
    _
  $region31: #{transformer_forward.12} parent=0 // pred_check_branch
    %160 = sbr.rel (0) target = $region33
  $region32: #{transformer_forward.12} parent=0 // pred_region
    _
  $region33: #{transformer_forward.12} parent=0 // pred_fallthru
    _
  // Predicated region
  $region34: #{transformer_forward.12} parent=0 // pred_check
    _
  $region35: #{transformer_forward.12} parent=0 // pred_check_branch
    %162 = sbr.rel (0) target = $region37
  $region36: #{transformer_forward.12} parent=0 // pred_region
    _
  $region37: #{transformer_forward.12} parent=0 // pred_fallthru
    _
  // Predicated region
  $region38: #{transformer_forward.12} parent=0 // pred_check
    _
  $region39: #{transformer_forward.12} parent=0 // pred_check_branch
    %164 = sbr.rel (0) target = $region41
  $region40: #{transformer_forward.12} parent=0 // pred_region
    _
  $region41: #{transformer_forward.12} parent=0 // pred_fallthru
    _

// kernel: transformer_forward.10
$region0: #{transformer_forward.10}
  #allocation0 [shape = 'u32[]', space=smem, size = 0x4, offset = 0x4, fixed_abs, tag = 'smem constant byte address 0x4 - core index']
  #allocation1 [shape = 'u32[72,128]{1,0:T(1,128)}', space=vmem, size = 0x9000, scoped, tag = 'internal scratch']
  %s0 = inlined_call_operand.vmem [shape: bf16[16,64], index: 0, kind: input, shape index: {}]
  %s1 = inlined_call_operand.vmem [shape: f32[1,64], index: 1, kind: input, shape index: {}]
  %s2 = inlined_call_operand.vmem [shape: bf16[64,128], index: 2, kind: input, shape index: {}]
  %s3 = inlined_call_operand.vmem [shape: f32[16,16], index: 3, kind: input, shape index: {}]
  %s4 = inlined_call_operand.vmem [shape: f32[16,16], index: 4, kind: input, shape index: {}]
  %s5 = inlined_call_operand.vmem [shape: bf16[16,64], index: 5, kind: output, shape index: {0}]
  %s6 = inlined_call_operand.vmem [shape: bf16[16,32], index: 6, kind: output, shape index: {1}]
  %s7 = inlined_call_operand.vmem [shape: bf16[16,32], index: 7, kind: output, shape index: {2}]
  %8 = xla_tuple %s5, %s6, %s7
  %s9 = sld [smem:[#allocation0]]
  $region46: #{transformer_forward.10} parent=0
    _
  %s11 = ssub.s32 1, %s9
  %s12 = scalar_select 0, %s11, %s9
  // Predicated region
  $region2: #{transformer_forward.10} parent=0 // pred_check
    _
  $region3: #{transformer_forward.10} parent=0 // pred_check_branch
    %14 = sbr.rel (0) target = $region5
  $region4: #{transformer_forward.10} parent=0 // pred_region
    _
  $region5: #{transformer_forward.10} parent=0 // pred_fallthru
    _
  // Predicated region
  $region6: #{transformer_forward.10} parent=0 // pred_check
    _
  $region7: #{transformer_forward.10} parent=0 // pred_check_branch
    %16 = sbr.rel (0) target = $region9
  $region8: #{transformer_forward.10} parent=0 // pred_region
    _
  $region9: #{transformer_forward.10} parent=0 // pred_fallthru
    _
  // Predicated region
  $region10: #{transformer_forward.10} parent=0 // pred_check
    _
  $region11: #{transformer_forward.10} parent=0 // pred_check_branch
    %18 = sbr.rel (0) target = $region13
  $region12: #{transformer_forward.10} parent=0 // pred_region
    _
  $region13: #{transformer_forward.10} parent=0 // pred_fallthru
    _
  // Predicated region
  $region14: #{transformer_forward.10} parent=0 // pred_check
    _
  $region15: #{transformer_forward.10} parent=0 // pred_check_branch
    %20 = sbr.rel (0) target = $region17
  $region16: #{transformer_forward.10} parent=0 // pred_region
    _
  $region17: #{transformer_forward.10} parent=0 // pred_fallthru
    _
  // Predicated region
  $region18: #{transformer_forward.10} parent=0 // pred_check
    _
  $region19: #{transformer_forward.10} parent=0 // pred_check_branch
    %22 = sbr.rel (0) target = $region21
  $region20: #{transformer_forward.10} parent=0 // pred_region
    _
  $region21: #{transformer_forward.10} parent=0 // pred_fallthru
    _
  %v24 = vld [vmem:[%s0] sm:$0xf]
  %v25 = vld [vmem:[%s0 + $0x4] sm:$0xf]
  %v26 = vunpack.c.l.bf16 %v24
  %v27 = vunpack.c.l.bf16 %v25
  %v28 = vmul.f32 %v26, %v26
  %v29 = vmul.f32 %v27, %v27
  %vm30 = vcmask 523264
  %v31 = vsel %vm30, %v28, 0.0
  %32 = vadd.xlane.f32.xlu0 %v31
  %v33 = vpop.xlane.xlu0 %32
  %v34 = vsel %vm30, %v29, 0.0
  %35 = vadd.xlane.f32.xlu0 %v34
  %v36 = vpop.xlane.xlu0 %35
  %v37 = vrcp.pop 64.0
  %v38 = vmul.f32 64.0, %v37
  %v39 = vsub.f32 1.0, %v38
  %v40 = vmul.f32 %v37, %v39
  %v41 = vadd.f32 %v37, %v40
  %vm42 = vweird.f32 %v37
  %v43 = vsel %vm42, %v37, %v41
  %v44 = vmul.f32 %v33, %v43
  %v45 = vmul.f32 %v36, %v43
  %v46 = vadd.f32 %v44, 1e-05
  %v47 = vadd.f32 %v45, 1e-05
  %v48 = vrsqrt.pop %v46
  %v49 = vmul.f32 %v48, %v46
  %v50 = vmul.f32 %v49, %v48
  %v51 = vmul.f32 0.5, %v50
  %v52 = vsub.f32 1.5, %v51
  %v53 = vmul.f32 %v48, %v52
  %vm54 = vweird.f32 %v46
  %vm55 = vweird.f32 %v48
  %vm56 = vmor %vm54, %vm55
  %v57 = vsel %vm56, %v48, %v53
  %v58 = vrsqrt.pop %v47
  %v59 = vmul.f32 %v58, %v47
  %v60 = vmul.f32 %v59, %v58
  %v61 = vmul.f32 0.5, %v60
  %v62 = vsub.f32 1.5, %v61
  %v63 = vmul.f32 %v58, %v62
  %vm64 = vweird.f32 %v47
  %vm65 = vweird.f32 %v58
  %vm66 = vmor %vm64, %vm65
  %v67 = vsel %vm66, %v58, %v63
  %v68 = vmul.f32 %v26, %v57
  %v69 = vmul.f32 %v27, %v67
  %v70 = vld [vmem:[%s1] sm:$0x1]
  %v72 = vperm.slane %v70, 0
  %v74 = vmul.f32 %v68, %v72
  %v75 = vmul.f32 %v69, %v72
  %v76 = vpack.c.bf16 %v75, %v74
  %v77 = vld [vmem:[%s2] sm:$0xf]
  %v78 = vld [vmem:[%s2 + $0x4] sm:$0xf]
  %v79 = vld [vmem:[%s2 + $0x8] sm:$0xf]
  %v80 = vld [vmem:[%s2 + $0xc] sm:$0xf]
  %v81 = vld [vmem:[%s2 + $0x10] sm:$0xf]
  %v82 = vld [vmem:[%s2 + $0x14] sm:$0xf]
  %v83 = vld [vmem:[%s2 + $0x18] sm:$0xf]
  %v84 = vld [vmem:[%s2 + $0x1c] sm:$0xf]
  %v93 = vunpack.c.l.b16 %v77
  %v94 = vunpack.c.l.b16 %v78
  %v95 = vunpack.c.l.b16 %v79
  %v96 = vunpack.c.l.b16 %v80
  %v97 = vunpack.c.l.b16 %v81
  %v98 = vunpack.c.l.b16 %v82
  %v99 = vunpack.c.l.b16 %v83
  %v100 = vunpack.c.l.b16 %v84
  %v101 = vpack.c.b16 %v94, %v93
  %v102 = vpack.c.b16 %v96, %v95
  %v103 = vpack.c.b16 %v98, %v97
  %v104 = vpack.c.b16 %v100, %v99
  %v110 = vsel %vm30, %v76, 0
  %112 = vmatpush.bf16.msra.mxu0 0
  %113 = vmatpush.bf16.msra.mxu0 0
  %114 = vmatpush.bf16.msra.mxu0 0
  %115 = vmatpush.bf16.msra.mxu0 0
  %116 = vmatpush.bf16.msra.mxu0 %v104
  %117 = vmatpush.bf16.msra.mxu0 %v103
  %118 = vmatpush.bf16.msra.mxu0 %v102
  %119 = vmatpush.bf16.msra.mxu0 %v101
  %120 = vmatmul.bf16.gmra.mxu0 %v110
  %v121 = vpop.f32.mrf.mxu0
  %v122 = vadd.f32 0.0, %v121
  %v123 = vpop.f32.mrf.mxu0
  %v124 = vadd.f32 0.0, %v123
  %125 = vdwg.mxu0
  %v126 = vld [vmem:[%s3] sm:$0xff]
  %v127 = vld [vmem:[%s3 + $0x8] sm:$0xff]
  %v128 = vld [vmem:[%s4] sm:$0xff]
  %v129 = vld [vmem:[%s4 + $0x8] sm:$0xff]
  %132 = vrot.lane.b32.xlu0 %v126, 16
  %v133 = vpop.permute.xlu0 %132
  %134 = vrot.lane.b32.xlu0 %v127, 16
  %v135 = vpop.permute.xlu0 %134
  %138 = vrot.lane.b32.xlu0 %v126, 32
  %v139 = vpop.permute.xlu0 %138
  %140 = vrot.lane.b32.xlu0 %v127, 32
  %v141 = vpop.permute.xlu0 %140
  %144 = vrot.lane.b32.xlu0 %v126, 48
  %v145 = vpop.permute.xlu0 %144
  %146 = vrot.lane.b32.xlu0 %v127, 48
  %v147 = vpop.permute.xlu0 %146
  %vm150 = vcmask 130048
  %v151 = vsel %vm150, %v126, %v133
  %v152 = vsel %vm150, %v127, %v135
  %vm153 = vcmask 261120
  %v154 = vsel %vm153, %v151, %v139
  %v155 = vsel %vm153, %v152, %v141
  %vm156 = vcmask 392192
  %v157 = vsel %vm156, %v154, %v145
  %v158 = vsel %vm156, %v155, %v147
  %161 = vrot.lane.b32.xlu0 %v128, 16
  %v162 = vpop.permute.xlu0 %161
  %163 = vrot.lane.b32.xlu0 %v129, 16
  %v164 = vpop.permute.xlu0 %163
  %167 = vrot.lane.b32.xlu0 %v128, 32
  %v168 = vpop.permute.xlu0 %167
  %169 = vrot.lane.b32.xlu0 %v129, 32
  %v170 = vpop.permute.xlu0 %169
  %173 = vrot.lane.b32.xlu0 %v128, 48
  %v174 = vpop.permute.xlu0 %173
  %175 = vrot.lane.b32.xlu0 %v129, 48
  %v176 = vpop.permute.xlu0 %175
  %v179 = vsel %vm150, %v128, %v162
  %v180 = vsel %vm150, %v129, %v164
  %v181 = vsel %vm153, %v179, %v168
  %v182 = vsel %vm153, %v180, %v170
  %v183 = vsel %vm156, %v181, %v174
  %v184 = vsel %vm156, %v182, %v176
  %187 = vrot.lane.b32.xlu0 %v122, 120
  %v188 = vpop.permute.xlu0 %187
  %189 = vrot.lane.b32.xlu0 %v124, 120
  %v190 = vpop.permute.xlu0 %189
  %193 = vrot.lane.b32.xlu0 %v122, 8
  %v194 = vpop.permute.xlu0 %193
  %195 = vrot.lane.b32.xlu0 %v124, 8
  %v196 = vpop.permute.xlu0 %195
  %vm199 = vcmask 64512
  %v200 = vsel %vm199, %v188, %v194
  %v201 = vsel %vm199, %v190, %v196
  %v202 = vsel %vm150, %v200, %v188
  %v203 = vsel %vm150, %v201, %v190
  %vm204 = vcmask 195584
  %v205 = vsel %vm204, %v202, %v194
  %v206 = vsel %vm204, %v203, %v196
  %v207 = vsel %vm153, %v205, %v188
  %v208 = vsel %vm153, %v206, %v190
  %vm209 = vcmask 326656
  %v210 = vsel %vm209, %v207, %v194
  %v211 = vsel %vm209, %v208, %v196
  %v212 = vsel %vm156, %v210, %v188
  %v213 = vsel %vm156, %v211, %v190
  %vm214 = vcmask 457728
  %v215 = vsel %vm214, %v212, %v194
  %v216 = vsel %vm214, %v213, %v196
  %v217 = vmul.f32 %v122, %v157
  %v218 = vmul.f32 %v124, %v158
  %v219 = vmul.f32 %v215, %v183
  %v220 = vmul.f32 %v216, %v184
  %v221 = vadd.f32 %v217, %v219
  %v222 = vadd.f32 %v218, %v220
  %v223 = vpack.c.bf16 %v221, %v221
  %v224 = vpack.c.bf16 %v222, %v222
  %vm225 = vcmask 519168
  %226 = vst.msk [vmem:[%s5] sm:$0xf] %vm225, %v223
  %227 = vst.msk [vmem:[%s5 + $0x4] sm:$0xf] %vm225, %v224
  %228 = vrot.lane.b32.xlu0 %v122, 56
  %v229 = vpop.permute.xlu0 %228
  %230 = vrot.lane.b32.xlu0 %v124, 56
  %v231 = vpop.permute.xlu0 %230
  %234 = vrot.lane.b32.xlu0 %v122, 72
  %v235 = vpop.permute.xlu0 %234
  %236 = vrot.lane.b32.xlu0 %v124, 72
  %v237 = vpop.permute.xlu0 %236
  %v240 = vsel %vm199, %v229, %v235
  %v241 = vsel %vm199, %v231, %v237
  %v242 = vsel %vm150, %v240, %v229
  %v243 = vsel %vm150, %v241, %v231
  %v244 = vsel %vm204, %v242, %v235
  %v245 = vsel %vm204, %v243, %v237
  %248 = vrot.lane.b32.xlu0 %v151, 64
  %v249 = vpop.permute.xlu0 %248
  %250 = vrot.lane.b32.xlu0 %v152, 64
  %v251 = vpop.permute.xlu0 %250
  %v254 = vmul.f32 %v122, %v249
  %v255 = vmul.f32 %v124, %v251
  %v256 = vmul.f32 %v244, %v179
  %v257 = vmul.f32 %v245, %v180
  %260 = vrot.lane.b32.xlu0 %v256, 64
  %v261 = vpop.permute.xlu0 %260
  %262 = vrot.lane.b32.xlu0 %v257, 64
  %v263 = vpop.permute.xlu0 %262
  %v266 = vadd.f32 %v254, %v261
  %v267 = vadd.f32 %v255, %v263
  %v268 = vpack.c.bf16 %v266, %v266
  %v269 = vpack.c.bf16 %v267, %v267
  %272 = vrot.lane.b32.xlu0 %v268, 64
  %v273 = vpop.permute.xlu0 %272
  %274 = vrot.lane.b32.xlu0 %v269, 64
  %v275 = vpop.permute.xlu0 %274
  %vm278 = vcmask 257024
  %279 = vst.msk [vmem:[%s6] sm:$0xf] %vm278, %v273
  %280 = vst.msk [vmem:[%s6 + $0x4] sm:$0xf] %vm278, %v275
  %v281 = vpack.c.bf16 %v122, %v122
  %v282 = vpack.c.bf16 %v124, %v124
  %285 = vrot.lane.b32.xlu0 %v281, 32
  %v286 = vpop.permute.xlu0 %285
  %287 = vrot.lane.b32.xlu0 %v282, 32
  %v288 = vpop.permute.xlu0 %287
  %291 = vst.msk [vmem:[%s7] sm:$0xf] %vm278, %v286
  %292 = vst.msk [vmem:[%s7 + $0x4] sm:$0xf] %vm278, %v288
  // Predicated region
  $region22: #{transformer_forward.10} parent=0 // pred_check
    _
  $region23: #{transformer_forward.10} parent=0 // pred_check_branch
    %294 = sbr.rel (0) target = $region25
  $region24: #{transformer_forward.10} parent=0 // pred_region
    _
  $region25: #{transformer_forward.10} parent=0 // pred_fallthru
    _
  // Predicated region
  $region26: #{transformer_forward.10} parent=0 // pred_check
    _
  $region27: #{transformer_forward.10} parent=0 // pred_check_branch
    %296 = sbr.rel (0) target = $region29
  $region28: #{transformer_forward.10} parent=0 // pred_region
    _
  $region29: #{transformer_forward.10} parent=0 // pred_fallthru
    _
  // Predicated region
  $region30: #{transformer_forward.10} parent=0 // pred_check
    _
  $region31: #{transformer_forward.10} parent=0 // pred_check_branch
    %298 = sbr.rel (0) target = $region33
  $region32: #{transformer_forward.10} parent=0 // pred_region
    _
  $region33: #{transformer_forward.10} parent=0 // pred_fallthru
    _
  // Predicated region
  $region34: #{transformer_forward.10} parent=0 // pred_check
    _
  $region35: #{transformer_forward.10} parent=0 // pred_check_branch
    %300 = sbr.rel (0) target = $region37
  $region36: #{transformer_forward.10} parent=0 // pred_region
    _
  $region37: #{transformer_forward.10} parent=0 // pred_fallthru
    _
  // Predicated region
  $region38: #{transformer_forward.10} parent=0 // pred_check
    _
  $region39: #{transformer_forward.10} parent=0 // pred_check_branch
    %302 = sbr.rel (0) target = $region41
  $region40: #{transformer_forward.10} parent=0 // pred_region
    _
  $region41: #{transformer_forward.10} parent=0 // pred_fallthru
    _
  // Predicated region
  $region42: #{transformer_forward.10} parent=0 // pred_check
    _
  $region43: #{transformer_forward.10} parent=0 // pred_check_branch
    %304 = sbr.rel (0) target = $region45
  $region44: #{transformer_forward.10} parent=0 // pred_region
    _
  $region45: #{transformer_forward.10} parent=0 // pred_fallthru
    _

// kernel: transformer_forward.18
$region0: #{transformer_forward.18}
  #allocation0 [shape = 'u32[]', space=smem, size = 0x4, offset = 0x4, fixed_abs, tag = 'smem constant byte address 0x4 - core index']
  #allocation1 [shape = 'u32[72,128]{1,0:T(1,128)}', space=vmem, size = 0x9000, scoped, tag = 'internal scratch']
  %s0 = inlined_call_operand.vmem [shape: bf16[16,64], index: 0, kind: input, shape index: {}]
  %s1 = inlined_call_operand.vmem [shape: f32[1,64], index: 1, kind: input, shape index: {}]
  %s2 = inlined_call_operand.vmem [shape: bf16[16,64], index: 2, kind: output, shape index: {}]
  %s3 = sld [smem:[#allocation0]]
  $region18: #{transformer_forward.18} parent=0
    _
  %s5 = ssub.s32 1, %s3
  %s6 = scalar_select 0, %s5, %s3
  // Predicated region
  $region2: #{transformer_forward.18} parent=0 // pred_check
    _
  $region3: #{transformer_forward.18} parent=0 // pred_check_branch
    %8 = sbr.rel (0) target = $region5
  $region4: #{transformer_forward.18} parent=0 // pred_region
    _
  $region5: #{transformer_forward.18} parent=0 // pred_fallthru
    _
  // Predicated region
  $region6: #{transformer_forward.18} parent=0 // pred_check
    _
  $region7: #{transformer_forward.18} parent=0 // pred_check_branch
    %10 = sbr.rel (0) target = $region9
  $region8: #{transformer_forward.18} parent=0 // pred_region
    _
  $region9: #{transformer_forward.18} parent=0 // pred_fallthru
    _
  %v11 = vld [vmem:[%s0] sm:$0xf]
  %v12 = vld [vmem:[%s0 + $0x4] sm:$0xf]
  %v13 = vunpack.c.l.bf16 %v11
  %v14 = vunpack.c.l.bf16 %v12
  %v15 = vmul.f32 %v13, %v13
  %v16 = vmul.f32 %v14, %v14
  %vm17 = vcmask 523264
  %v18 = vsel %vm17, %v15, 0.0
  %19 = vadd.xlane.f32.xlu0 %v18
  %v20 = vpop.xlane.xlu0 %19
  %v21 = vsel %vm17, %v16, 0.0
  %22 = vadd.xlane.f32.xlu0 %v21
  %v23 = vpop.xlane.xlu0 %22
  %v24 = vrcp.pop 64.0
  %v25 = vmul.f32 64.0, %v24
  %v26 = vsub.f32 1.0, %v25
  %v27 = vmul.f32 %v24, %v26
  %v28 = vadd.f32 %v24, %v27
  %vm29 = vweird.f32 %v24
  %v30 = vsel %vm29, %v24, %v28
  %v31 = vmul.f32 %v20, %v30
  %v32 = vmul.f32 %v23, %v30
  %v33 = vadd.f32 %v31, 1e-05
  %v34 = vadd.f32 %v32, 1e-05
  %v35 = vrsqrt.pop %v33
  %v36 = vmul.f32 %v35, %v33
  %v37 = vmul.f32 %v36, %v35
  %v38 = vmul.f32 0.5, %v37
  %v39 = vsub.f32 1.5, %v38
  %v40 = vmul.f32 %v35, %v39
  %vm41 = vweird.f32 %v33
  %vm42 = vweird.f32 %v35
  %vm43 = vmor %vm41, %vm42
  %v44 = vsel %vm43, %v35, %v40
  %v45 = vrsqrt.pop %v34
  %v46 = vmul.f32 %v45, %v34
  %v47 = vmul.f32 %v46, %v45
  %v48 = vmul.f32 0.5, %v47
  %v49 = vsub.f32 1.5, %v48
  %v50 = vmul.f32 %v45, %v49
  %vm51 = vweird.f32 %v34
  %vm52 = vweird.f32 %v45
  %vm53 = vmor %vm51, %vm52
  %v54 = vsel %vm53, %v45, %v50
  %v55 = vmul.f32 %v13, %v44
  %v56 = vmul.f32 %v14, %v54
  %v57 = vld [vmem:[%s1] sm:$0x1]
  %v59 = vperm.slane %v57, 0
  %v61 = vmul.f32 %v55, %v59
  %v62 = vmul.f32 %v56, %v59
  %v63 = vpack.c.bf16 %v61, %v61
  %v64 = vpack.c.bf16 %v62, %v62
  %vm65 = vcmask 519168
  %66 = vst.msk [vmem:[%s2] sm:$0xf] %vm65, %v63
  %67 = vst.msk [vmem:[%s2 + $0x4] sm:$0xf] %vm65, %v64
  // Predicated region
  $region10: #{transformer_forward.18} parent=0 // pred_check
    _
  $region11: #{transformer_forward.18} parent=0 // pred_check_branch
    %69 = sbr.rel (0) target = $region13
  $region12: #{transformer_forward.18} parent=0 // pred_region
    _
  $region13: #{transformer_forward.18} parent=0 // pred_fallthru
    _
  // Predicated region
  $region14: #{transformer_forward.18} parent=0 // pred_check
    _
  $region15: #{transformer_forward.18} parent=0 // pred_check_branch
    %71 = sbr.rel (0) target = $region17
  $region16: #{transformer_forward.18} parent=0 // pred_region
    _
  $region17: #{transformer_forward.18} parent=0 // pred_fallthru
    _

// kernel: transformer_forward.13
$region0: #{transformer_forward.13}
  #allocation0 [shape = 'u32[]', space=smem, size = 0x4, offset = 0x4, fixed_abs, tag = 'smem constant byte address 0x4 - core index']
  #allocation1 [shape = 'u32[72,128]{1,0:T(1,128)}', space=vmem, size = 0x9000, scoped, tag = 'internal scratch']
  #allocation2 [shape = 'f32[16,64]{1,0:T(8,128)}', space=vmem, size = 0x2000, scoped, tag = 'scratch operand']
  %s0 = inlined_call_operand.vmem [shape: bf16[16,64], index: 0, kind: input, shape index: {}]
  %s1 = inlined_call_operand.vmem [shape: bf16[64,192], index: 1, kind: input, shape index: {}]
  %s2 = inlined_call_operand.vmem [shape: bf16[64,192], index: 2, kind: input, shape index: {}]
  %s3 = inlined_call_operand.vmem [shape: bf16[192,64], index: 3, kind: input, shape index: {}]
  %s4 = inlined_call_operand.vmem [shape: bf16[16,64], index: 4, kind: input, shape index: {}]
  %s5 = inlined_call_operand.vmem [shape: bf16[16,64], index: 5, kind: output, shape index: {}]
  %s6 = sld [smem:[#allocation0]]
  $region38: #{transformer_forward.13} parent=0
    _
  %s8 = ssub.s32 1, %s6
  %s9 = scalar_select 0, %s8, %s6
  // Predicated region
  $region2: #{transformer_forward.13} parent=0 // pred_check
    _
  $region3: #{transformer_forward.13} parent=0 // pred_check_branch
    %11 = sbr.rel (0) target = $region5
  $region4: #{transformer_forward.13} parent=0 // pred_region
    _
  $region5: #{transformer_forward.13} parent=0 // pred_fallthru
    _
  // Predicated region
  $region6: #{transformer_forward.13} parent=0 // pred_check
    _
  $region7: #{transformer_forward.13} parent=0 // pred_check_branch
    %13 = sbr.rel (0) target = $region9
  $region8: #{transformer_forward.13} parent=0 // pred_region
    _
  $region9: #{transformer_forward.13} parent=0 // pred_fallthru
    _
  // Predicated region
  $region10: #{transformer_forward.13} parent=0 // pred_check
    _
  $region11: #{transformer_forward.13} parent=0 // pred_check_branch
    %15 = sbr.rel (0) target = $region13
  $region12: #{transformer_forward.13} parent=0 // pred_region
    _
  $region13: #{transformer_forward.13} parent=0 // pred_fallthru
    _
  // Predicated region
  $region14: #{transformer_forward.13} parent=0 // pred_check
    _
  $region15: #{transformer_forward.13} parent=0 // pred_check_branch
    %17 = sbr.rel (0) target = $region17
  $region16: #{transformer_forward.13} parent=0 // pred_region
    _
  $region17: #{transformer_forward.13} parent=0 // pred_fallthru
    _
  // Predicated region
  $region18: #{transformer_forward.13} parent=0 // pred_check
    _
  $region19: #{transformer_forward.13} parent=0 // pred_check_branch
    %19 = sbr.rel (0) target = $region21
  $region20: #{transformer_forward.13} parent=0 // pred_region
    _
  $region21: #{transformer_forward.13} parent=0 // pred_fallthru
    _
  %p21 = scmp.eq.s32.totalorder 0, 0
  // Predicated region
  $region22: #{transformer_forward.13} parent=0 // pred_check
    %p22 = pneg %p21
  $region23: #{transformer_forward.13} parent=0 // pred_check_branch
    %24 = sbr.rel (%p22) target = $region25
  $region24: #{transformer_forward.13} parent=0 // pred_region
    %v25 = vld [vmem:[%s4] sm:$0xf]
    %v26 = vld [vmem:[%s4 + $0x4] sm:$0xf]
    %v27 = vunpack.c.l.bf16 %v25
    %v28 = vunpack.c.l.bf16 %v26
    %vm29 = vcmask 523264
    %30 = vst.msk [vmem:[#allocation2] sm:$0xff] %vm29, %v27
    %31 = vst.msk [vmem:[#allocation2 + $0x8] sm:$0xff] %vm29, %v28
  $region25: #{transformer_forward.13} parent=0 // pred_fallthru
    _
  %v32 = vld [vmem:[%s0] sm:$0xf]
  %v33 = vld [vmem:[%s0 + $0x4] sm:$0xf]
  %v34 = vld [vmem:[%s1] sm:$0xff]
  %v35 = vld [vmem:[%s1 + $0x8] sm:$0xff]
  %v36 = vld [vmem:[%s1 + $0x10] sm:$0xff]
  %v37 = vld [vmem:[%s1 + $0x18] sm:$0xff]
  %v38 = vld [vmem:[%s1 + $0x20] sm:$0xff]
  %v39 = vld [vmem:[%s1 + $0x28] sm:$0xff]
  %v40 = vld [vmem:[%s1 + $0x30] sm:$0xff]
  %v41 = vld [vmem:[%s1 + $0x38] sm:$0xff]
  %v44 = vunpack.c.l.b16 %v32
  %v45 = vunpack.c.l.b16 %v33
  %v46 = vpack.c.b16 %v45, %v44
  %v55 = vunpack.c.l.b16 %v34
  %v56 = vunpack.c.h.b16 %v34
  %v57 = vunpack.c.l.b16 %v35
  %v58 = vunpack.c.h.b16 %v35
  %v59 = vunpack.c.l.b16 %v36
  %v60 = vunpack.c.h.b16 %v36
  %v61 = vunpack.c.l.b16 %v37
  %v62 = vunpack.c.h.b16 %v37
  %v63 = vunpack.c.l.b16 %v38
  %v64 = vunpack.c.h.b16 %v38
  %v65 = vunpack.c.l.b16 %v39
  %v66 = vunpack.c.h.b16 %v39
  %v67 = vunpack.c.l.b16 %v40
  %v68 = vunpack.c.h.b16 %v40
  %v69 = vunpack.c.l.b16 %v41
  %v70 = vunpack.c.h.b16 %v41
  %v71 = vpack.c.b16 %v57, %v55
  %v72 = vpack.c.b16 %v58, %v56
  %v73 = vpack.c.b16 %v61, %v59
  %v74 = vpack.c.b16 %v62, %v60
  %v75 = vpack.c.b16 %v65, %v63
  %v76 = vpack.c.b16 %v66, %v64
  %v77 = vpack.c.b16 %v69, %v67
  %v78 = vpack.c.b16 %v70, %v68
  %vm87 = vcmask 523264
  %v89 = vsel %vm87, %v46, 0
  %91 = vmatpush.bf16.msra.mxu0 0
  %92 = vmatpush.bf16.msra.mxu0 0
  %93 = vmatpush.bf16.msra.mxu0 0
  %94 = vmatpush.bf16.msra.mxu0 0
  %95 = vmatpush.bf16.msra.mxu0 %v77
  %96 = vmatpush.bf16.msra.mxu0 %v75
  %97 = vmatpush.bf16.msra.mxu0 %v73
  %98 = vmatpush.bf16.msra.mxu0 %v71
  %99 = vmatmul.bf16.gmra.mxu0 %v89
  %v100 = vpop.f32.mrf.mxu0
  %v101 = vadd.f32 0.0, %v100
  %v102 = vpop.f32.mrf.mxu0
  %v103 = vadd.f32 0.0, %v102
  %104 = vdwg.mxu0
  %105 = vmatpush.bf16.msra.mxu0 0
  %106 = vmatpush.bf16.msra.mxu0 0
  %107 = vmatpush.bf16.msra.mxu0 0
  %108 = vmatpush.bf16.msra.mxu0 0
  %109 = vmatpush.bf16.msra.mxu0 %v78
  %110 = vmatpush.bf16.msra.mxu0 %v76
  %111 = vmatpush.bf16.msra.mxu0 %v74
  %112 = vmatpush.bf16.msra.mxu0 %v72
  %113 = vmatmul.bf16.gmra.mxu0 %v89
  %v114 = vpop.f32.mrf.mxu0
  %v115 = vadd.f32 0.0, %v114
  %v116 = vpop.f32.mrf.mxu0
  %v117 = vadd.f32 0.0, %v116
  %118 = vdwg.mxu0
  %v119 = vld [vmem:[%s2] sm:$0xff]
  %v120 = vld [vmem:[%s2 + $0x8] sm:$0xff]
  %v121 = vld [vmem:[%s2 + $0x10] sm:$0xff]
  %v122 = vld [vmem:[%s2 + $0x18] sm:$0xff]
  %v123 = vld [vmem:[%s2 + $0x20] sm:$0xff]
  %v124 = vld [vmem:[%s2 + $0x28] sm:$0xff]
  %v125 = vld [vmem:[%s2 + $0x30] sm:$0xff]
  %v126 = vld [vmem:[%s2 + $0x38] sm:$0xff]
  %v135 = vunpack.c.l.b16 %v119
  %v136 = vunpack.c.h.b16 %v119
  %v137 = vunpack.c.l.b16 %v120
  %v138 = vunpack.c.h.b16 %v120
  %v139 = vunpack.c.l.b16 %v121
  %v140 = vunpack.c.h.b16 %v121
  %v141 = vunpack.c.l.b16 %v122
  %v142 = vunpack.c.h.b16 %v122
  %v143 = vunpack.c.l.b16 %v123
  %v144 = vunpack.c.h.b16 %v123
  %v145 = vunpack.c.l.b16 %v124
  %v146 = vunpack.c.h.b16 %v124
  %v147 = vunpack.c.l.b16 %v125
  %v148 = vunpack.c.h.b16 %v125
  %v149 = vunpack.c.l.b16 %v126
  %v150 = vunpack.c.h.b16 %v126
  %v151 = vpack.c.b16 %v137, %v135
  %v152 = vpack.c.b16 %v138, %v136
  %v153 = vpack.c.b16 %v141, %v139
  %v154 = vpack.c.b16 %v142, %v140
  %v155 = vpack.c.b16 %v145, %v143
  %v156 = vpack.c.b16 %v146, %v144
  %v157 = vpack.c.b16 %v149, %v147
  %v158 = vpack.c.b16 %v150, %v148
  %167 = vmatpush.bf16.msra.mxu0 0
  %168 = vmatpush.bf16.msra.mxu0 0
  %169 = vmatpush.bf16.msra.mxu0 0
  %170 = vmatpush.bf16.msra.mxu0 0
  %171 = vmatpush.bf16.msra.mxu0 %v157
  %172 = vmatpush.bf16.msra.mxu0 %v155
  %173 = vmatpush.bf16.msra.mxu0 %v153
  %174 = vmatpush.bf16.msra.mxu0 %v151
  %175 = vmatmul.bf16.gmra.mxu0 %v89
  %v176 = vpop.f32.mrf.mxu0
  %v177 = vadd.f32 0.0, %v176
  %v178 = vpop.f32.mrf.mxu0
  %v179 = vadd.f32 0.0, %v178
  %180 = vdwg.mxu0
  %181 = vmatpush.bf16.msra.mxu0 0
  %182 = vmatpush.bf16.msra.mxu0 0
  %183 = vmatpush.bf16.msra.mxu0 0
  %184 = vmatpush.bf16.msra.mxu0 0
  %185 = vmatpush.bf16.msra.mxu0 %v158
  %186 = vmatpush.bf16.msra.mxu0 %v156
  %187 = vmatpush.bf16.msra.mxu0 %v154
  %188 = vmatpush.bf16.msra.mxu0 %v152
  %189 = vmatmul.bf16.gmra.mxu0 %v89
  %v190 = vpop.f32.mrf.mxu0
  %v191 = vadd.f32 0.0, %v190
  %v192 = vpop.f32.mrf.mxu0
  %v193 = vadd.f32 0.0, %v192
  %194 = vdwg.mxu0
  %v195 = vxor.u32 %v101, 2147483648
  %v196 = vxor.u32 %v115, 2147483648
  %v197 = vxor.u32 %v103, 2147483648
  %v198 = vxor.u32 %v117, 2147483648
  %v199 = vmul.f32 %v195, 1.442695
  %v200 = vpow.pop %v199
  %v201 = vmul.f32 %v196, 1.442695
  %v202 = vpow.pop %v201
  %v203 = vmul.f32 %v197, 1.442695
  %v204 = vpow.pop %v203
  %v205 = vmul.f32 %v198, 1.442695
  %v206 = vpow.pop %v205
  %v207 = vadd.f32 %v200, 1.0
  %v208 = vadd.f32 %v202, 1.0
  %v209 = vadd.f32 %v204, 1.0
  %v210 = vadd.f32 %v206, 1.0
  %v211 = vrcp.pop %v207
  %v212 = vmul.f32 %v207, %v211
  %v213 = vsub.f32 1.0, %v212
  %v214 = vmul.f32 %v211, %v213
  %v215 = vadd.f32 %v211, %v214
  %vm216 = vweird.f32 %v207
  %vm217 = vweird.f32 %v211
  %vm218 = vmor %vm216, %vm217
  %v219 = vsel %vm218, %v211, %v215
  %v220 = vand.u32 2147483647, %v207
  %vm221 = vcmp.eq.f32.partialorder %v220, 8.507059e+37
  %v222 = vand.u32 %v207, 2147483648
  %v223 = vor.u32 1.1754944e-38, %v222
  %v224 = vsel %vm221, %v223, %v219
  %v225 = vmul.f32 1.0, %v224
  %v226 = vrcp.pop %v208
  %v227 = vmul.f32 %v208, %v226
  %v228 = vsub.f32 1.0, %v227
  %v229 = vmul.f32 %v226, %v228
  %v230 = vadd.f32 %v226, %v229
  %vm231 = vweird.f32 %v208
  %vm232 = vweird.f32 %v226
  %vm233 = vmor %vm231, %vm232
  %v234 = vsel %vm233, %v226, %v230
  %v235 = vand.u32 2147483647, %v208
  %vm236 = vcmp.eq.f32.partialorder %v235, 8.507059e+37
  %v237 = vand.u32 %v208, 2147483648
  %v238 = vor.u32 1.1754944e-38, %v237
  %v239 = vsel %vm236, %v238, %v234
  %v240 = vmul.f32 1.0, %v239
  %v241 = vrcp.pop %v209
  %v242 = vmul.f32 %v209, %v241
  %v243 = vsub.f32 1.0, %v242
  %v244 = vmul.f32 %v241, %v243
  %v245 = vadd.f32 %v241, %v244
  %vm246 = vweird.f32 %v209
  %vm247 = vweird.f32 %v241
  %vm248 = vmor %vm246, %vm247
  %v249 = vsel %vm248, %v241, %v245
  %v250 = vand.u32 2147483647, %v209
  %vm251 = vcmp.eq.f32.partialorder %v250, 8.507059e+37
  %v252 = vand.u32 %v209, 2147483648
  %v253 = vor.u32 1.1754944e-38, %v252
  %v254 = vsel %vm251, %v253, %v249
  %v255 = vmul.f32 1.0, %v254
  %v256 = vrcp.pop %v210
  %v257 = vmul.f32 %v210, %v256
  %v258 = vsub.f32 1.0, %v257
  %v259 = vmul.f32 %v256, %v258
  %v260 = vadd.f32 %v256, %v259
  %vm261 = vweird.f32 %v210
  %vm262 = vweird.f32 %v256
  %vm263 = vmor %vm261, %vm262
  %v264 = vsel %vm263, %v256, %v260
  %v265 = vand.u32 2147483647, %v210
  %vm266 = vcmp.eq.f32.partialorder %v265, 8.507059e+37
  %v267 = vand.u32 %v210, 2147483648
  %v268 = vor.u32 1.1754944e-38, %v267
  %v269 = vsel %vm266, %v268, %v264
  %v270 = vmul.f32 1.0, %v269
  %v271 = vmul.f32 %v101, %v225
  %v272 = vmul.f32 %v115, %v240
  %v273 = vmul.f32 %v103, %v255
  %v274 = vmul.f32 %v117, %v270
  %v275 = vmul.f32 %v271, %v177
  %v276 = vmul.f32 %v272, %v191
  %v277 = vmul.f32 %v273, %v179
  %v278 = vmul.f32 %v274, %v193
  %v279 = vpack.c.bf16 %v277, %v275
  %v280 = vpack.c.bf16 %v278, %v276
  %v281 = vld [vmem:[#allocation2] sm:$0xff]
  %v282 = vld [vmem:[#allocation2 + $0x8] sm:$0xff]
  %v283 = vld [vmem:[%s3] sm:$0xf]
  %v284 = vld [vmem:[%s3 + $0x4] sm:$0xf]
  %v285 = vld [vmem:[%s3 + $0x8] sm:$0xf]
  %v286 = vld [vmem:[%s3 + $0xc] sm:$0xf]
  %v287 = vld [vmem:[%s3 + $0x10] sm:$0xf]
  %v288 = vld [vmem:[%s3 + $0x14] sm:$0xf]
  %v289 = vld [vmem:[%s3 + $0x18] sm:$0xf]
  %v290 = vld [vmem:[%s3 + $0x1c] sm:$0xf]
  %v291 = vld [vmem:[%s3 + $0x20] sm:$0xf]
  %v292 = vld [vmem:[%s3 + $0x24] sm:$0xf]
  %v293 = vld [vmem:[%s3 + $0x28] sm:$0xf]
  %v294 = vld [vmem:[%s3 + $0x2c] sm:$0xf]
  %v295 = vld [vmem:[%s3 + $0x30] sm:$0xf]
  %v296 = vld [vmem:[%s3 + $0x34] sm:$0xf]
  %v297 = vld [vmem:[%s3 + $0x38] sm:$0xf]
  %v298 = vld [vmem:[%s3 + $0x3c] sm:$0xf]
  %v299 = vld [vmem:[%s3 + $0x40] sm:$0xf]
  %v300 = vld [vmem:[%s3 + $0x44] sm:$0xf]
  %v301 = vld [vmem:[%s3 + $0x48] sm:$0xf]
  %v302 = vld [vmem:[%s3 + $0x4c] sm:$0xf]
  %v303 = vld [vmem:[%s3 + $0x50] sm:$0xf]
  %v304 = vld [vmem:[%s3 + $0x54] sm:$0xf]
  %v305 = vld [vmem:[%s3 + $0x58] sm:$0xf]
  %v306 = vld [vmem:[%s3 + $0x5c] sm:$0xf]
  %v331 = vunpack.c.l.b16 %v283
  %v332 = vunpack.c.l.b16 %v284
  %v333 = vunpack.c.l.b16 %v285
  %v334 = vunpack.c.l.b16 %v286
  %v335 = vunpack.c.l.b16 %v287
  %v336 = vunpack.c.l.b16 %v288
  %v337 = vunpack.c.l.b16 %v289
  %v338 = vunpack.c.l.b16 %v290
  %v339 = vunpack.c.l.b16 %v291
  %v340 = vunpack.c.l.b16 %v292
  %v341 = vunpack.c.l.b16 %v293
  %v342 = vunpack.c.l.b16 %v294
  %v343 = vunpack.c.l.b16 %v295
  %v344 = vunpack.c.l.b16 %v296
  %v345 = vunpack.c.l.b16 %v297
  %v346 = vunpack.c.l.b16 %v298
  %v347 = vunpack.c.l.b16 %v299
  %v348 = vunpack.c.l.b16 %v300
  %v349 = vunpack.c.l.b16 %v301
  %v350 = vunpack.c.l.b16 %v302
  %v351 = vunpack.c.l.b16 %v303
  %v352 = vunpack.c.l.b16 %v304
  %v353 = vunpack.c.l.b16 %v305
  %v354 = vunpack.c.l.b16 %v306
  %v355 = vpack.c.b16 %v332, %v331
  %v356 = vpack.c.b16 %v334, %v333
  %v357 = vpack.c.b16 %v336, %v335
  %v358 = vpack.c.b16 %v338, %v337
  %v359 = vpack.c.b16 %v340, %v339
  %v360 = vpack.c.b16 %v342, %v341
  %v361 = vpack.c.b16 %v344, %v343
  %v362 = vpack.c.b16 %v346, %v345
  %v363 = vpack.c.b16 %v348, %v347
  %v364 = vpack.c.b16 %v350, %v349
  %v365 = vpack.c.b16 %v352, %v351
  %v366 = vpack.c.b16 %v354, %v353
  %v380 = vsel %vm87, %v280, 0
  %382 = vmatpush.bf16.msra.mxu0 %v362
  %383 = vmatpush.bf16.msra.mxu0 %v361
  %384 = vmatpush.bf16.msra.mxu0 %v360
  %385 = vmatpush.bf16.msra.mxu0 %v359
  %386 = vmatpush.bf16.msra.mxu0 %v358
  %387 = vmatpush.bf16.msra.mxu0 %v357
  %388 = vmatpush.bf16.msra.mxu0 %v356
  %389 = vmatpush.bf16.msra.mxu0 %v355
  %390 = vmatmul.bf16.gmra.mxu0 %v279
  %v391 = vpop.f32.mrf.mxu0
  %v392 = vadd.f32 0.0, %v391
  %v393 = vpop.f32.mrf.mxu0
  %v394 = vadd.f32 0.0, %v393
  %395 = vdwg.mxu0
  %396 = vmatpush.bf16.msra.mxu0 0
  %397 = vmatpush.bf16.msra.mxu0 0
  %398 = vmatpush.bf16.msra.mxu0 0
  %399 = vmatpush.bf16.msra.mxu0 0
  %400 = vmatpush.bf16.msra.mxu0 %v366
  %401 = vmatpush.bf16.msra.mxu0 %v365
  %402 = vmatpush.bf16.msra.mxu0 %v364
  %403 = vmatpush.bf16.msra.mxu0 %v363
  %404 = vmatmul.bf16.gmra.mxu0 %v380
  %v405 = vpop.f32.mrf.mxu0
  %v406 = vadd.f32 %v392, %v405
  %v407 = vpop.f32.mrf.mxu0
  %v408 = vadd.f32 %v394, %v407
  %409 = vdwg.mxu0
  %v410 = vadd.f32 %v281, %v406
  %v411 = vadd.f32 %v282, %v408
  %412 = vst.msk [vmem:[#allocation2] sm:$0xff] %vm87, %v410
  %413 = vst.msk [vmem:[#allocation2 + $0x8] sm:$0xff] %vm87, %v411
  // Predicated region
  $region26: #{transformer_forward.13} parent=0 // pred_check
    %p414 = pneg %p21
  $region27: #{transformer_forward.13} parent=0 // pred_check_branch
    %416 = sbr.rel (%p414) target = $region29
  $region28: #{transformer_forward.13} parent=0 // pred_region
    %v417 = vld [vmem:[#allocation2] sm:$0xff]
    %v418 = vld [vmem:[#allocation2 + $0x8] sm:$0xff]
    %v419 = vpack.c.bf16 %v417, %v417
    %v420 = vpack.c.bf16 %v418, %v418
    %vm421 = vcmask 519168
    %422 = vst.msk [vmem:[%s5] sm:$0xf] %vm421, %v419
    %423 = vst.msk [vmem:[%s5 + $0x4] sm:$0xf] %vm421, %v420
  $region29: #{transformer_forward.13} parent=0 // pred_fallthru
    _
  // Predicated region
  $region30: #{transformer_forward.13} parent=0 // pred_check
    _
  $region31: #{transformer_forward.13} parent=0 // pred_check_branch
    %425 = sbr.rel (0) target = $region33
  $region32: #{transformer_forward.13} parent=0 // pred_region
    _
  $region33: #{transformer_forward.13} parent=0 // pred_fallthru
    _
  // Predicated region
  $region34: #{transformer_forward.13} parent=0 // pred_check
    _
  $region35: #{transformer_forward.13} parent=0 // pred_check_branch
    %427 = sbr.rel (0) target = $region37
  $region36: #{transformer_forward.13} parent=0 // pred_region
    _
  $region37: #{transformer_forward.13} parent=0 // pred_fallthru
    _

// kernel: transformer_forward.19
$region0: #{transformer_forward.19}
  #allocation0 [shape = 'u32[]', space=smem, size = 0x4, offset = 0x4, fixed_abs, tag = 'smem constant byte address 0x4 - core index']
  #allocation1 [shape = 'u32[72,128]{1,0:T(1,128)}', space=vmem, size = 0x9000, scoped, tag = 'internal scratch']
  #allocation2 [shape = 'f32[16,128]{1,0:T(8,128)}', space=vmem, size = 0x2000, scoped, tag = 'scratch operand']
  %s0 = inlined_call_operand.vmem [shape: bf16[16,64], index: 0, kind: input, shape index: {}]
  %s1 = inlined_call_operand.vmem [shape: bf16[64,128], index: 1, kind: input, shape index: {}]
  %s2 = inlined_call_operand.hbm [shape: f32[16,128], index: 2, kind: output, shape index: {}]
  %s3 = sld [smem:[#allocation0]]
  $region26: #{transformer_forward.19} parent=0
    _
  %s5 = ssub.s32 1, %s3
  %s6 = scalar_select 0, %s5, %s3
  $region1: #{transformer_forward.19} parent=0
    #allocation3 [shape = 'u8[8192]{0}', space=vmem, size = 0x2000, scoped, tag = 'output window, operand 0, single buffered']
    #allocation4 [shape = 's32[1]{0}', space=sflag, size = 0x4, scoped, tag = 'scoped memory for transformer_forward.19']
    %7 = vsyncpa [#allocation4], 0
    // Predicated region
    $region2: #{transformer_forward.19} parent=1 // pred_check
      _
    $region3: #{transformer_forward.19} parent=1 // pred_check_branch
      %9 = sbr.rel (0) target = $region5
    $region4: #{transformer_forward.19} parent=1 // pred_region
      _
    $region5: #{transformer_forward.19} parent=1 // pred_fallthru
      _
    // Predicated region
    $region6: #{transformer_forward.19} parent=1 // pred_check
      _
    $region7: #{transformer_forward.19} parent=1 // pred_check_branch
      %11 = sbr.rel (0) target = $region9
    $region8: #{transformer_forward.19} parent=1 // pred_region
      _
    $region9: #{transformer_forward.19} parent=1 // pred_fallthru
      _
    %p13 = scmp.eq.s32.totalorder 0, 0
    // Predicated region
    $region10: #{transformer_forward.19} parent=1 // pred_check
      %p14 = pneg %p13
    $region11: #{transformer_forward.19} parent=1 // pred_check_branch
      %16 = sbr.rel (%p14) target = $region13
    $region12: #{transformer_forward.19} parent=1 // pred_region
      %17 = vst [vmem:[#allocation2] sm:$0xff] 0.0
      %18 = vst [vmem:[#allocation2 + $0x8] sm:$0xff] 0.0
    $region13: #{transformer_forward.19} parent=1 // pred_fallthru
      _
    %v19 = vld [vmem:[#allocation2] sm:$0xff]
    %v20 = vld [vmem:[#allocation2 + $0x8] sm:$0xff]
    %v21 = vld [vmem:[%s0] sm:$0xf]
    %v22 = vld [vmem:[%s0 + $0x4] sm:$0xf]
    %v23 = vld [vmem:[%s1] sm:$0xf]
    %v24 = vld [vmem:[%s1 + $0x4] sm:$0xf]
    %v25 = vld [vmem:[%s1 + $0x8] sm:$0xf]
    %v26 = vld [vmem:[%s1 + $0xc] sm:$0xf]
    %v27 = vld [vmem:[%s1 + $0x10] sm:$0xf]
    %v28 = vld [vmem:[%s1 + $0x14] sm:$0xf]
    %v29 = vld [vmem:[%s1 + $0x18] sm:$0xf]
    %v30 = vld [vmem:[%s1 + $0x1c] sm:$0xf]
    %v33 = vunpack.c.l.b16 %v21
    %v34 = vunpack.c.l.b16 %v22
    %v35 = vpack.c.b16 %v34, %v33
    %v44 = vunpack.c.l.b16 %v23
    %v45 = vunpack.c.l.b16 %v24
    %v46 = vunpack.c.l.b16 %v25
    %v47 = vunpack.c.l.b16 %v26
    %v48 = vunpack.c.l.b16 %v27
    %v49 = vunpack.c.l.b16 %v28
    %v50 = vunpack.c.l.b16 %v29
    %v51 = vunpack.c.l.b16 %v30
    %v52 = vpack.c.b16 %v45, %v44
    %v53 = vpack.c.b16 %v47, %v46
    %v54 = vpack.c.b16 %v49, %v48
    %v55 = vpack.c.b16 %v51, %v50
    %vm60 = vcmask 523264
    %v62 = vsel %vm60, %v35, 0
    %64 = vmatpush.bf16.msra.mxu0 0
    %65 = vmatpush.bf16.msra.mxu0 0
    %66 = vmatpush.bf16.msra.mxu0 0
    %67 = vmatpush.bf16.msra.mxu0 0
    %68 = vmatpush.bf16.msra.mxu0 %v55
    %69 = vmatpush.bf16.msra.mxu0 %v54
    %70 = vmatpush.bf16.msra.mxu0 %v53
    %71 = vmatpush.bf16.msra.mxu0 %v52
    %72 = vmatmul.bf16.gmra.mxu0 %v62
    %v73 = vpop.f32.mrf.mxu0
    %v74 = vadd.f32 0.0, %v73
    %v75 = vpop.f32.mrf.mxu0
    %v76 = vadd.f32 0.0, %v75
    %77 = vdwg.mxu0
    %v78 = vadd.f32 %v19, %v74
    %v79 = vadd.f32 %v20, %v76
    %80 = vst [vmem:[#allocation2] sm:$0xff] %v78
    %81 = vst [vmem:[#allocation2 + $0x8] sm:$0xff] %v79
    // Predicated region
    $region14: #{transformer_forward.19} parent=1 // pred_check
      %p82 = pneg %p13
    $region15: #{transformer_forward.19} parent=1 // pred_check_branch
      %84 = sbr.rel (%p82) target = $region17
    $region16: #{transformer_forward.19} parent=1 // pred_region
      %v85 = vld [vmem:[#allocation2] sm:$0xff]
      %v86 = vld [vmem:[#allocation2 + $0x8] sm:$0xff]
      %87 = vst [vmem:[#allocation3] sm:$0xff] %v85
      %88 = vst [vmem:[#allocation3 + $0x8] sm:$0xff] %v86
    $region17: #{transformer_forward.19} parent=1 // pred_fallthru
      _
    // Predicated region
    $region18: #{transformer_forward.19} parent=1 // pred_check
      _
    $region19: #{transformer_forward.19} parent=1 // pred_check_branch
      %90 = sbr.rel (0) target = $region21
    $region20: #{transformer_forward.19} parent=1 // pred_region
      %92 = vsyncadd [#allocation4], 0
      %s93 = sshll.u32 [#allocation3], 4
      %s94 = int_to_ptr.vmem [resolvable:$true] %s93
      %s95 = sshll.u32 %s2, 4
      %s96 = int_to_ptr.hbm [resolvable:$true] %s95
      %101 = dma.vmem_to_hbm [thread:$0]  %s94, 256, %s96, [#allocation4], 128, 128, 8
    $region21: #{transformer_forward.19} parent=1 // pred_fallthru
      _
    // Predicated region
    $region22: #{transformer_forward.19} parent=1 // pred_check
      _
    $region23: #{transformer_forward.19} parent=1 // pred_check_branch
      %103 = sbr.rel (0) target = $region25
    $region24: #{transformer_forward.19} parent=1 // pred_region
      %105 = dma.done [#allocation4], 256
    $region25: #{transformer_forward.19} parent=1 // pred_fallthru
      _
    %106 = vsyncpa [#allocation4], 1

</llo_original>
